<compile_context>
chip_gen: v5e
topology: v5e:2x2
jax: 0.10.0
libtpu: 0.0.40
codegen_flags: <defaults>
</compile_context>

<pallas_src>
from functools import partial

import jax
import jax.numpy as jnp
from jax.experimental import pallas as pl
from jax.experimental.pallas import tpu as pltpu


# ---------------------------------------------------------------------------
# Model hyper-parameters (synthetic; see TODO above)
# ---------------------------------------------------------------------------
FEAT_DIM = 8          # Conv1d in_channels
HID = 32              # TDNN hidden channels
EMB = 32              # x-vector embedding dim (FC output)
NUM_CLASSES = 16
KERNEL_SIZES = (5, 3, 3, 1, 1)
C_PAD = 128           # lane-padded channel width (one full vreg lane span)


# ---------------------------------------------------------------------------
# Single fused kernel: net1..net5 + SP + FC + FCRelu + (FC2∘Final)(softmax)
# ---------------------------------------------------------------------------
def _fused_forward_kernel(x_ref, conv_w_ref, conv_b_ref, fc_w_ref, fc_b_ref,
                          head_w_ref, head_b_ref, out_ref, xvec_ref,
                          *, B, T, hid, num_classes, ksizes, cins):
    R = B * T
    C = x_ref.shape[-1]
    x = x_ref[...]                                    # (R, C) f32, time-major rows

    # Hoisted time-shift row masks (shared by every layer / tap). A shifted row
    # is valid iff its shifted time index stays inside [0, T) -- this also
    # zeroes rows that would cross a batch boundary.
    t = jax.lax.broadcasted_iota(jnp.int32, (R, 1), 0) % T
    needed = sorted({j - k // 2 for k in ksizes for j in range(k)} - {0})
    masks = {d: jnp.logical_and(t + d >= 0, t + d < T).astype(jnp.float32)
             for d in needed}

    # net1..net5 : TDNN frame layers.  All k taps are packed into disjoint
    # lane ranges [j*cin, (j+1)*cin) of a single (R, 128) operand, so each
    # layer is exactly ONE 128-deep MXU contraction against a pre-packed
    # (128, 128) bf16 weight slab (taps stacked along rows).
    for i, (k, cin) in enumerate(zip(ksizes, cins)):
        pad = k // 2
        if k == 1:
            packed = x                                # tap 0 already at lanes [0, cin)
        else:
            packed = jnp.zeros_like(x)
            for j in range(k):                        # static unrolled, k <= 5
                d = j - pad
                # y[b*T + t] = x[b*T + t + d]  (masked outside the utterance)
                xs = x if d == 0 else pltpu.roll(x, (-d) % R, 0) * masks[d]
                if j:                                 # move live lanes to [j*cin, ...)
                    xs = pltpu.roll(xs, j * cin, 1)   # wrap brings only zero lanes
                packed = packed + xs
        y = jnp.dot(packed.astype(jnp.bfloat16), conv_w_ref[i],
                    preferred_element_type=jnp.float32)
        x = jnp.maximum(y + conv_b_ref[i], 0.0)       # bias/ReLU in f32

    # SP : statistics pooling over time, vectorized over batch
    # (T is a multiple of 8, so the reshape is tile aligned).
    x3 = x.reshape(B, T, C)
    mean3 = jnp.sum(x3, axis=1, keepdims=True) * (1.0 / T)
    diff = x3 - mean3
    var3 = jnp.sum(diff * diff, axis=1, keepdims=True) * (1.0 / (T - 1))
    mean = mean3.reshape(B, C)
    std = jnp.sqrt(var3).reshape(B, C)                # unbiased, like torch.std
    # TODO(synk): the real SP module may use biased std and/or an eps term.
    # Compact to one 128-lane row: [mean | std | 0 ...].  Padded lanes of
    # `std` are exactly zero, so the lane roll cannot corrupt the mean lanes.
    stats = mean + pltpu.roll(std, hid, 1)            # (B, C)

    # FC : embedding (returned pre-ReLU, matching `xvectorS = x` in the spec)
    xvec = jnp.dot(stats.astype(jnp.bfloat16), fc_w_ref[...],
                   preferred_element_type=jnp.float32) + fc_b_ref[...]
    xvec_ref[...] = xvec                              # full-width lane store

    # FCRelu, then FC2 and Final folded offline into a single matmul.
    h = jnp.maximum(xvec, 0.0)
    logits = jnp.dot(h.astype(jnp.bfloat16), head_w_ref[...],
                     preferred_element_type=jnp.float32) + head_b_ref[...]

    # Softmax over the real classes (padded lanes masked out).
    lane = jax.lax.broadcasted_iota(jnp.int32, logits.shape, 1)
    logits = jnp.where(lane < num_classes, logits, -1e30)
    m = jnp.max(logits, axis=-1, keepdims=True)
    e = jnp.exp(logits - m)
    denom = jnp.sum(e, axis=-1, keepdims=True)
    r = pl.reciprocal(denom, approx=True)             # EUP slot
    r = r * (2.0 - denom * r)                         # one Newton refinement
    out_ref[...] = e * r


def by_model_forward(x_nct, params):
    """x_nct: (B, FEAT_DIM, T) — same NCT convention as the PyTorch Conv1d."""
    B, c_in, T = x_nct.shape
    x = jnp.transpose(x_nct, (0, 2, 1)).reshape(B * T, c_in)   # time-major rows
    x = jnp.pad(x, ((0, 0), (0, C_PAD - c_in)))                # lane-pad to 128

    cins = (c_in,) + (HID,) * (len(KERNEL_SIZES) - 1)
    kernel = partial(_fused_forward_kernel, B=B, T=T, hid=HID,
                     num_classes=NUM_CLASSES, ksizes=KERNEL_SIZES, cins=cins)

    vmem = lambda: pl.BlockSpec(memory_space=pltpu.MemorySpace.VMEM)
    out_pad, xvec_pad = pl.pallas_call(
        kernel,
        out_shape=(jax.ShapeDtypeStruct((B, C_PAD), jnp.float32),
                   jax.ShapeDtypeStruct((B, C_PAD), jnp.float32)),
        in_specs=[vmem() for _ in range(7)],
        out_specs=(vmem(), vmem()),
        compiler_params=pltpu.CompilerParams(vmem_limit_bytes=8 * 1024 * 1024),
    )(x,
      params["conv_w"], params["conv_b"],
      params["fc_w"], params["fc_b"],
      params["head_w"], params["head_b"])
    return out_pad[:, :NUM_CLASSES], xvec_pad[:, :EMB]


# ---------------------------------------------------------------------------
# Deterministic synthetic weights, pre-packed to the lane-dense 128 layouts
# ---------------------------------------------------------------------------
def _linear_init(key, fan_in, shape):
    bound = 1.0 / jnp.sqrt(fan_in)
    return jax.random.uniform(key, shape, jnp.float32, -bound, bound)


def init_params(key):
    params = {}
    n_layers = len(KERNEL_SIZES)
    cins = (FEAT_DIM,) + (HID,) * (n_layers - 1)

    # Conv layers: taps stacked along the contraction rows of a (128,128) slab.
    conv_w = jnp.zeros((n_layers, C_PAD, C_PAD), jnp.float32)
    conv_b = jnp.zeros((n_layers, 1, C_PAD), jnp.float32)
    for i, (k, cin) in enumerate(zip(KERNEL_SIZES, cins)):
        key, kw, kb = jax.random.split(key, 3)
        w = _linear_init(kw, k * cin, (k * cin, HID))   # rows = [tap0|tap1|...]
        b = _linear_init(kb, k * cin, (HID,))
        conv_w = conv_w.at[i, :k * cin, :HID].set(w)
        conv_b = conv_b.at[i, 0, :HID].set(b)
    params["conv_w"] = conv_w.astype(jnp.bfloat16)
    params["conv_b"] = conv_b                           # f32 bias

    # FC : pooled stats layout is [mean (lanes 0..HID) | std (lanes HID..2HID)]
    key, kw, kb = jax.random.split(key, 3)
    fc_w = _linear_init(kw, 2 * HID, (2 * HID, EMB))
    fc_b = _linear_init(kb, 2 * HID, (EMB,))
    params["fc_w"] = (jnp.zeros((C_PAD, C_PAD), jnp.float32)
                      .at[:2 * HID, :EMB].set(fc_w)).astype(jnp.bfloat16)
    params["fc_b"] = jnp.zeros((1, C_PAD), jnp.float32).at[0, :EMB].set(fc_b)

    # FC2 and Final folded offline (no nonlinearity between them here).
    key, k1, k2, k3, k4 = jax.random.split(key, 5)
    fc2_w = _linear_init(k1, EMB, (EMB, EMB))
    fc2_b = _linear_init(k2, EMB, (EMB,))
    fin_w = _linear_init(k3, EMB, (EMB, NUM_CLASSES))
    fin_b = _linear_init(k4, EMB, (NUM_CLASSES,))
    head_w = fc2_w @ fin_w                              # (EMB, NUM_CLASSES)
    head_b = fc2_b @ fin_w + fin_b                      # (NUM_CLASSES,)
    params["head_w"] = (jnp.zeros((C_PAD, C_PAD), jnp.float32)
                        .at[:EMB, :NUM_CLASSES].set(head_w)).astype(jnp.bfloat16)
    params["head_b"] = (jnp.zeros((1, C_PAD), jnp.float32)
                        .at[0, :NUM_CLASSES].set(head_b))
    return params


if __name__ == "__main__":
    key = jax.random.PRNGKey(0)
    key, k_in = jax.random.split(key)

    B, T = 2, 32                                        # T multiple of 8
    x = jax.random.normal(k_in, (B, FEAT_DIM, T), jnp.float32)   # NCT input
    params = init_params(key)

    out, xvec = jax.jit(by_model_forward)(x, params)
    jax.block_until_ready((out, xvec))

    assert out.shape == (B, NUM_CLASSES)
    assert xvec.shape == (B, EMB)
    assert bool(jnp.all(jnp.isfinite(out))) and bool(jnp.all(jnp.isfinite(xvec)))
    # softmax rows should sum to ~1
    assert bool(jnp.allclose(jnp.sum(out, axis=-1), 1.0, atol=1e-4))
    print("KERNEL_OK")
</pallas_src>

<mosaic_0001>
module attributes {stable_mosaic.version = 11 : i64} {
  func.func @_fused_forward_kernel(%arg0: memref<64x128xf32, #tpu.memory_space<vmem>>, %arg1: memref<5x128x128xbf16, #tpu.memory_space<vmem>>, %arg2: memref<5x1x128xf32, #tpu.memory_space<vmem>>, %arg3: memref<128x128xbf16, #tpu.memory_space<vmem>>, %arg4: memref<1x128xf32, #tpu.memory_space<vmem>>, %arg5: memref<128x128xbf16, #tpu.memory_space<vmem>>, %arg6: memref<1x128xf32, #tpu.memory_space<vmem>>, %arg7: memref<2x128xf32, #tpu.memory_space<vmem>>, %arg8: memref<2x128xf32, #tpu.memory_space<vmem>>) attributes {dimension_semantics = [], scalar_prefetch = 0 : i64, scratch_operands = 0 : i64, tpu.core_type = #tpu.core_type<tc>} {
    %c0 = arith.constant 0 : index
    %c0_0 = arith.constant 0 : index
    %0 = vector.load %arg0[%c0, %c0_0] : memref<64x128xf32, #tpu.memory_space<vmem>>, vector<64x128xf32>
    %1 = tpu.iota {dimensions = array<i32: 0>} : vector<64x1xi32>
    %c32_i32 = arith.constant 32 : i32
    %c0_i32 = arith.constant 0 : i32
    %2 = arith.cmpi eq, %c32_i32, %c0_i32 : i32
    %c1_i32 = arith.constant 1 : i32
    %3 = arith.select %2, %c1_i32, %c32_i32 : i32
    %4 = vector.broadcast %3 : i32 to vector<64x1xi32>
    %5 = arith.remsi %1, %4 : vector<64x1xi32>
    %c0_i32_1 = arith.constant 0 : i32
    %6 = vector.broadcast %c0_i32_1 : i32 to vector<64x1xi32>
    %7 = arith.cmpi ne, %5, %6 : vector<64x1xi32>
    %c0_i32_2 = arith.constant 0 : i32
    %8 = vector.broadcast %c0_i32_2 : i32 to vector<64x1xi32>
    %9 = arith.cmpi slt, %5, %8 : vector<64x1xi32>
    %c0_i32_3 = arith.constant 0 : i32
    %10 = arith.cmpi slt, %3, %c0_i32_3 : i32
    %11 = vector.broadcast %10 : i1 to vector<64x1xi1>
    %12 = vector.broadcast %11 : vector<64x1xi1> to vector<64x1xi1>
    %13 = arith.xori %9, %12 : vector<64x1xi1>
    %14 = arith.andi %13, %7 : vector<64x1xi1>
    %15 = vector.broadcast %3 : i32 to vector<64x1xi32>
    %16 = arith.addi %5, %15 : vector<64x1xi32>
    %17 = arith.select %14, %16, %5 : vector<64x1xi1>, vector<64x1xi32>
    %c-2_i32 = arith.constant -2 : i32
    %18 = vector.broadcast %c-2_i32 : i32 to vector<64x1xi32>
    %19 = arith.addi %17, %18 : vector<64x1xi32>
    %c0_i32_4 = arith.constant 0 : i32
    %20 = vector.broadcast %c0_i32_4 : i32 to vector<64x1xi32>
    %21 = arith.cmpi sge, %19, %20 : vector<64x1xi32>
    %c-2_i32_5 = arith.constant -2 : i32
    %22 = vector.broadcast %c-2_i32_5 : i32 to vector<64x1xi32>
    %23 = arith.addi %17, %22 : vector<64x1xi32>
    %c32_i32_6 = arith.constant 32 : i32
    %24 = vector.broadcast %c32_i32_6 : i32 to vector<64x1xi32>
    %25 = arith.cmpi slt, %23, %24 : vector<64x1xi32>
    %26 = arith.andi %21, %25 : vector<64x1xi1>
    %27 = arith.extui %26 : vector<64x1xi1> to vector<64x1xi32>
    %28 = arith.sitofp %27 : vector<64x1xi32> to vector<64x1xf32>
    %c-1_i32 = arith.constant -1 : i32
    %29 = vector.broadcast %c-1_i32 : i32 to vector<64x1xi32>
    %30 = arith.addi %17, %29 : vector<64x1xi32>
    %c0_i32_7 = arith.constant 0 : i32
    %31 = vector.broadcast %c0_i32_7 : i32 to vector<64x1xi32>
    %32 = arith.cmpi sge, %30, %31 : vector<64x1xi32>
    %c-1_i32_8 = arith.constant -1 : i32
    %33 = vector.broadcast %c-1_i32_8 : i32 to vector<64x1xi32>
    %34 = arith.addi %17, %33 : vector<64x1xi32>
    %c32_i32_9 = arith.constant 32 : i32
    %35 = vector.broadcast %c32_i32_9 : i32 to vector<64x1xi32>
    %36 = arith.cmpi slt, %34, %35 : vector<64x1xi32>
    %37 = arith.andi %32, %36 : vector<64x1xi1>
    %38 = arith.extui %37 : vector<64x1xi1> to vector<64x1xi32>
    %39 = arith.sitofp %38 : vector<64x1xi32> to vector<64x1xf32>
    %c1_i32_10 = arith.constant 1 : i32
    %40 = vector.broadcast %c1_i32_10 : i32 to vector<64x1xi32>
    %41 = arith.addi %17, %40 : vector<64x1xi32>
    %c0_i32_11 = arith.constant 0 : i32
    %42 = vector.broadcast %c0_i32_11 : i32 to vector<64x1xi32>
    %43 = arith.cmpi sge, %41, %42 : vector<64x1xi32>
    %c1_i32_12 = arith.constant 1 : i32
    %44 = vector.broadcast %c1_i32_12 : i32 to vector<64x1xi32>
    %45 = arith.addi %17, %44 : vector<64x1xi32>
    %c32_i32_13 = arith.constant 32 : i32
    %46 = vector.broadcast %c32_i32_13 : i32 to vector<64x1xi32>
    %47 = arith.cmpi slt, %45, %46 : vector<64x1xi32>
    %48 = arith.andi %43, %47 : vector<64x1xi1>
    %49 = arith.extui %48 : vector<64x1xi1> to vector<64x1xi32>
    %50 = arith.sitofp %49 : vector<64x1xi32> to vector<64x1xf32>
    %c2_i32 = arith.constant 2 : i32
    %51 = vector.broadcast %c2_i32 : i32 to vector<64x1xi32>
    %52 = arith.addi %17, %51 : vector<64x1xi32>
    %c0_i32_14 = arith.constant 0 : i32
    %53 = vector.broadcast %c0_i32_14 : i32 to vector<64x1xi32>
    %54 = arith.cmpi sge, %52, %53 : vector<64x1xi32>
    %c2_i32_15 = arith.constant 2 : i32
    %55 = vector.broadcast %c2_i32_15 : i32 to vector<64x1xi32>
    %56 = arith.addi %17, %55 : vector<64x1xi32>
    %c32_i32_16 = arith.constant 32 : i32
    %57 = vector.broadcast %c32_i32_16 : i32 to vector<64x1xi32>
    %58 = arith.cmpi slt, %56, %57 : vector<64x1xi32>
    %59 = arith.andi %54, %58 : vector<64x1xi1>
    %60 = arith.extui %59 : vector<64x1xi1> to vector<64x1xi32>
    %61 = arith.sitofp %60 : vector<64x1xi32> to vector<64x1xf32>
    %cst = arith.constant 0.000000e+00 : f32
    %62 = vector.broadcast %cst : f32 to vector<64x128xf32>
    %c2_i32_17 = arith.constant 2 : i32
    %63 = tpu.dynamic_rotate %0 by %c2_i32_17 dim 0 : vector<64x128xf32>, i32 -> vector<64x128xf32>
    %64 = vector.broadcast %28 : vector<64x1xf32> to vector<64x128xf32>
    %65 = arith.mulf %63, %64 : vector<64x128xf32>
    %66 = arith.addf %62, %65 : vector<64x128xf32>
    %c1_i32_18 = arith.constant 1 : i32
    %67 = tpu.dynamic_rotate %0 by %c1_i32_18 dim 0 : vector<64x128xf32>, i32 -> vector<64x128xf32>
    %68 = vector.broadcast %39 : vector<64x1xf32> to vector<64x128xf32>
    %69 = arith.mulf %67, %68 : vector<64x128xf32>
    %c8_i32 = arith.constant 8 : i32
    %70 = tpu.dynamic_rotate %69 by %c8_i32 dim 1 : vector<64x128xf32>, i32 -> vector<64x128xf32>
    %71 = arith.addf %66, %70 : vector<64x128xf32>
    %c16_i32 = arith.constant 16 : i32
    %72 = tpu.dynamic_rotate %0 by %c16_i32 dim 1 : vector<64x128xf32>, i32 -> vector<64x128xf32>
    %73 = arith.addf %71, %72 : vector<64x128xf32>
    %c63_i32 = arith.constant 63 : i32
    %74 = tpu.dynamic_rotate %0 by %c63_i32 dim 0 : vector<64x128xf32>, i32 -> vector<64x128xf32>
    %75 = vector.broadcast %50 : vector<64x1xf32> to vector<64x128xf32>
    %76 = arith.mulf %74, %75 : vector<64x128xf32>
    %c24_i32 = arith.constant 24 : i32
    %77 = tpu.dynamic_rotate %76 by %c24_i32 dim 1 : vector<64x128xf32>, i32 -> vector<64x128xf32>
    %78 = arith.addf %73, %77 : vector<64x128xf32>
    %c62_i32 = arith.constant 62 : i32
    %79 = tpu.dynamic_rotate %0 by %c62_i32 dim 0 : vector<64x128xf32>, i32 -> vector<64x128xf32>
    %80 = vector.broadcast %61 : vector<64x1xf32> to vector<64x128xf32>
    %81 = arith.mulf %79, %80 : vector<64x128xf32>
    %c32_i32_19 = arith.constant 32 : i32
    %82 = tpu.dynamic_rotate %81 by %c32_i32_19 dim 1 : vector<64x128xf32>, i32 -> vector<64x128xf32>
    %83 = arith.addf %78, %82 : vector<64x128xf32>
    %84 = arith.truncf %83 : vector<64x128xf32> to vector<64x128xbf16>
    %c0_20 = arith.constant 0 : index
    %c0_21 = arith.constant 0 : index
    %c0_22 = arith.constant 0 : index
    %85 = vector.load %arg1[%c0_20, %c0_21, %c0_22] : memref<5x128x128xbf16, #tpu.memory_space<vmem>>, vector<1x128x128xbf16>
    %86 = vector.shape_cast %85 : vector<1x128x128xbf16> to vector<128x128xbf16>
    %cst_23 = arith.constant dense<0.000000e+00> : vector<64x128xf32>
    %87 = tpu.matmul %84, %86, %cst_23 {dimension_numbers = #tpu.dot_dimension_numbers<[1], [0], [0], [1], [0, 0, 1, 1], [], []>} : vector<64x128xbf16>, vector<128x128xbf16>, vector<64x128xf32> -> vector<64x128xf32>
    %c0_24 = arith.constant 0 : index
    %c0_25 = arith.constant 0 : index
    %c0_26 = arith.constant 0 : index
    %88 = vector.load %arg2[%c0_24, %c0_25, %c0_26] : memref<5x1x128xf32, #tpu.memory_space<vmem>>, vector<1x1x128xf32>
    %89 = vector.shape_cast %88 : vector<1x1x128xf32> to vector<1x128xf32>
    %90 = vector.broadcast %89 : vector<1x128xf32> to vector<64x128xf32>
    %91 = arith.addf %87, %90 : vector<64x128xf32>
    %cst_27 = arith.constant 0.000000e+00 : f32
    %92 = vector.broadcast %cst_27 : f32 to vector<64x128xf32>
    %93 = arith.maximumf %91, %92 : vector<64x128xf32>
    %cst_28 = arith.constant 0.000000e+00 : f32
    %94 = vector.broadcast %cst_28 : f32 to vector<64x128xf32>
    %c1_i32_29 = arith.constant 1 : i32
    %95 = tpu.dynamic_rotate %93 by %c1_i32_29 dim 0 : vector<64x128xf32>, i32 -> vector<64x128xf32>
    %96 = vector.broadcast %39 : vector<64x1xf32> to vector<64x128xf32>
    %97 = arith.mulf %95, %96 : vector<64x128xf32>
    %98 = arith.addf %94, %97 : vector<64x128xf32>
    %c32_i32_30 = arith.constant 32 : i32
    %99 = tpu.dynamic_rotate %93 by %c32_i32_30 dim 1 : vector<64x128xf32>, i32 -> vector<64x128xf32>
    %100 = arith.addf %98, %99 : vector<64x128xf32>
    %c63_i32_31 = arith.constant 63 : i32
    %101 = tpu.dynamic_rotate %93 by %c63_i32_31 dim 0 : vector<64x128xf32>, i32 -> vector<64x128xf32>
    %102 = vector.broadcast %50 : vector<64x1xf32> to vector<64x128xf32>
    %103 = arith.mulf %101, %102 : vector<64x128xf32>
    %c64_i32 = arith.constant 64 : i32
    %104 = tpu.dynamic_rotate %103 by %c64_i32 dim 1 : vector<64x128xf32>, i32 -> vector<64x128xf32>
    %105 = arith.addf %100, %104 : vector<64x128xf32>
    %106 = arith.truncf %105 : vector<64x128xf32> to vector<64x128xbf16>
    %c1 = arith.constant 1 : index
    %c0_32 = arith.constant 0 : index
    %c0_33 = arith.constant 0 : index
    %107 = vector.load %arg1[%c1, %c0_32, %c0_33] : memref<5x128x128xbf16, #tpu.memory_space<vmem>>, vector<1x128x128xbf16>
    %108 = vector.shape_cast %107 : vector<1x128x128xbf16> to vector<128x128xbf16>
    %cst_34 = arith.constant dense<0.000000e+00> : vector<64x128xf32>
    %109 = tpu.matmul %106, %108, %cst_34 {dimension_numbers = #tpu.dot_dimension_numbers<[1], [0], [0], [1], [0, 0, 1, 1], [], []>} : vector<64x128xbf16>, vector<128x128xbf16>, vector<64x128xf32> -> vector<64x128xf32>
    %c1_35 = arith.constant 1 : index
    %c0_36 = arith.constant 0 : index
    %c0_37 = arith.constant 0 : index
    %110 = vector.load %arg2[%c1_35, %c0_36, %c0_37] : memref<5x1x128xf32, #tpu.memory_space<vmem>>, vector<1x1x128xf32>
    %111 = vector.shape_cast %110 : vector<1x1x128xf32> to vector<1x128xf32>
    %112 = vector.broadcast %111 : vector<1x128xf32> to vector<64x128xf32>
    %113 = arith.addf %109, %112 : vector<64x128xf32>
    %cst_38 = arith.constant 0.000000e+00 : f32
    %114 = vector.broadcast %cst_38 : f32 to vector<64x128xf32>
    %115 = arith.maximumf %113, %114 : vector<64x128xf32>
    %cst_39 = arith.constant 0.000000e+00 : f32
    %116 = vector.broadcast %cst_39 : f32 to vector<64x128xf32>
    %c1_i32_40 = arith.constant 1 : i32
    %117 = tpu.dynamic_rotate %115 by %c1_i32_40 dim 0 : vector<64x128xf32>, i32 -> vector<64x128xf32>
    %118 = vector.broadcast %39 : vector<64x1xf32> to vector<64x128xf32>
    %119 = arith.mulf %117, %118 : vector<64x128xf32>
    %120 = arith.addf %116, %119 : vector<64x128xf32>
    %c32_i32_41 = arith.constant 32 : i32
    %121 = tpu.dynamic_rotate %115 by %c32_i32_41 dim 1 : vector<64x128xf32>, i32 -> vector<64x128xf32>
    %122 = arith.addf %120, %121 : vector<64x128xf32>
    %c63_i32_42 = arith.constant 63 : i32
    %123 = tpu.dynamic_rotate %115 by %c63_i32_42 dim 0 : vector<64x128xf32>, i32 -> vector<64x128xf32>
    %124 = vector.broadcast %50 : vector<64x1xf32> to vector<64x128xf32>
    %125 = arith.mulf %123, %124 : vector<64x128xf32>
    %c64_i32_43 = arith.constant 64 : i32
    %126 = tpu.dynamic_rotate %125 by %c64_i32_43 dim 1 : vector<64x128xf32>, i32 -> vector<64x128xf32>
    %127 = arith.addf %122, %126 : vector<64x128xf32>
    %128 = arith.truncf %127 : vector<64x128xf32> to vector<64x128xbf16>
    %c2 = arith.constant 2 : index
    %c0_44 = arith.constant 0 : index
    %c0_45 = arith.constant 0 : index
    %129 = vector.load %arg1[%c2, %c0_44, %c0_45] : memref<5x128x128xbf16, #tpu.memory_space<vmem>>, vector<1x128x128xbf16>
    %130 = vector.shape_cast %129 : vector<1x128x128xbf16> to vector<128x128xbf16>
    %cst_46 = arith.constant dense<0.000000e+00> : vector<64x128xf32>
    %131 = tpu.matmul %128, %130, %cst_46 {dimension_numbers = #tpu.dot_dimension_numbers<[1], [0], [0], [1], [0, 0, 1, 1], [], []>} : vector<64x128xbf16>, vector<128x128xbf16>, vector<64x128xf32> -> vector<64x128xf32>
    %c2_47 = arith.constant 2 : index
    %c0_48 = arith.constant 0 : index
    %c0_49 = arith.constant 0 : index
    %132 = vector.load %arg2[%c2_47, %c0_48, %c0_49] : memref<5x1x128xf32, #tpu.memory_space<vmem>>, vector<1x1x128xf32>
    %133 = vector.shape_cast %132 : vector<1x1x128xf32> to vector<1x128xf32>
    %134 = vector.broadcast %133 : vector<1x128xf32> to vector<64x128xf32>
    %135 = arith.addf %131, %134 : vector<64x128xf32>
    %cst_50 = arith.constant 0.000000e+00 : f32
    %136 = vector.broadcast %cst_50 : f32 to vector<64x128xf32>
    %137 = arith.maximumf %135, %136 : vector<64x128xf32>
    %138 = arith.truncf %137 : vector<64x128xf32> to vector<64x128xbf16>
    %c3 = arith.constant 3 : index
    %c0_51 = arith.constant 0 : index
    %c0_52 = arith.constant 0 : index
    %139 = vector.load %arg1[%c3, %c0_51, %c0_52] : memref<5x128x128xbf16, #tpu.memory_space<vmem>>, vector<1x128x128xbf16>
    %140 = vector.shape_cast %139 : vector<1x128x128xbf16> to vector<128x128xbf16>
    %cst_53 = arith.constant dense<0.000000e+00> : vector<64x128xf32>
    %141 = tpu.matmul %138, %140, %cst_53 {dimension_numbers = #tpu.dot_dimension_numbers<[1], [0], [0], [1], [0, 0, 1, 1], [], []>} : vector<64x128xbf16>, vector<128x128xbf16>, vector<64x128xf32> -> vector<64x128xf32>
    %c3_54 = arith.constant 3 : index
    %c0_55 = arith.constant 0 : index
    %c0_56 = arith.constant 0 : index
    %142 = vector.load %arg2[%c3_54, %c0_55, %c0_56] : memref<5x1x128xf32, #tpu.memory_space<vmem>>, vector<1x1x128xf32>
    %143 = vector.shape_cast %142 : vector<1x1x128xf32> to vector<1x128xf32>
    %144 = vector.broadcast %143 : vector<1x128xf32> to vector<64x128xf32>
    %145 = arith.addf %141, %144 : vector<64x128xf32>
    %cst_57 = arith.constant 0.000000e+00 : f32
    %146 = vector.broadcast %cst_57 : f32 to vector<64x128xf32>
    %147 = arith.maximumf %145, %146 : vector<64x128xf32>
    %148 = arith.truncf %147 : vector<64x128xf32> to vector<64x128xbf16>
    %c4 = arith.constant 4 : index
    %c0_58 = arith.constant 0 : index
    %c0_59 = arith.constant 0 : index
    %149 = vector.load %arg1[%c4, %c0_58, %c0_59] : memref<5x128x128xbf16, #tpu.memory_space<vmem>>, vector<1x128x128xbf16>
    %150 = vector.shape_cast %149 : vector<1x128x128xbf16> to vector<128x128xbf16>
    %cst_60 = arith.constant dense<0.000000e+00> : vector<64x128xf32>
    %151 = tpu.matmul %148, %150, %cst_60 {dimension_numbers = #tpu.dot_dimension_numbers<[1], [0], [0], [1], [0, 0, 1, 1], [], []>} : vector<64x128xbf16>, vector<128x128xbf16>, vector<64x128xf32> -> vector<64x128xf32>
    %c4_61 = arith.constant 4 : index
    %c0_62 = arith.constant 0 : index
    %c0_63 = arith.constant 0 : index
    %152 = vector.load %arg2[%c4_61, %c0_62, %c0_63] : memref<5x1x128xf32, #tpu.memory_space<vmem>>, vector<1x1x128xf32>
    %153 = vector.shape_cast %152 : vector<1x1x128xf32> to vector<1x128xf32>
    %154 = vector.broadcast %153 : vector<1x128xf32> to vector<64x128xf32>
    %155 = arith.addf %151, %154 : vector<64x128xf32>
    %cst_64 = arith.constant 0.000000e+00 : f32
    %156 = vector.broadcast %cst_64 : f32 to vector<64x128xf32>
    %157 = arith.maximumf %155, %156 : vector<64x128xf32>
    %158 = vector.shape_cast %157 : vector<64x128xf32> to vector<2x32x128xf32>
    %cst_65 = arith.constant dense<0.000000e+00> : vector<2x128xf32>
    %159 = vector.multi_reduction <add>, %158, %cst_65 [1] : vector<2x32x128xf32> to vector<2x128xf32>
    %160 = vector.shape_cast %159 : vector<2x128xf32> to vector<2x1x128xf32>
    %cst_66 = arith.constant 3.125000e-02 : f32
    %161 = vector.broadcast %cst_66 : f32 to vector<2x1x128xf32>
    %162 = arith.mulf %160, %161 : vector<2x1x128xf32>
    %163 = vector.broadcast %162 : vector<2x1x128xf32> to vector<2x32x128xf32>
    %164 = arith.subf %158, %163 : vector<2x32x128xf32>
    %165 = arith.mulf %164, %164 : vector<2x32x128xf32>
    %cst_67 = arith.constant dense<0.000000e+00> : vector<2x128xf32>
    %166 = vector.multi_reduction <add>, %165, %cst_67 [1] : vector<2x32x128xf32> to vector<2x128xf32>
    %167 = vector.shape_cast %166 : vector<2x128xf32> to vector<2x1x128xf32>
    %cst_68 = arith.constant 0.0322580636 : f32
    %168 = vector.broadcast %cst_68 : f32 to vector<2x1x128xf32>
    %169 = arith.mulf %167, %168 : vector<2x1x128xf32>
    %170 = vector.shape_cast %162 : vector<2x1x128xf32> to vector<2x128xf32>
    %171 = math.sqrt %169 : vector<2x1x128xf32>
    %172 = vector.shape_cast %171 : vector<2x1x128xf32> to vector<2x128xf32>
    %c32_i32_69 = arith.constant 32 : i32
    %173 = tpu.dynamic_rotate %172 by %c32_i32_69 dim 1 : vector<2x128xf32>, i32 -> vector<2x128xf32>
    %174 = arith.addf %170, %173 : vector<2x128xf32>
    %175 = arith.truncf %174 : vector<2x128xf32> to vector<2x128xbf16>
    %c0_70 = arith.constant 0 : index
    %c0_71 = arith.constant 0 : index
    %176 = vector.load %arg3[%c0_70, %c0_71] : memref<128x128xbf16, #tpu.memory_space<vmem>>, vector<128x128xbf16>
    %cst_72 = arith.constant dense<0.000000e+00> : vector<2x128xf32>
    %177 = tpu.matmul %175, %176, %cst_72 {dimension_numbers = #tpu.dot_dimension_numbers<[1], [0], [0], [1], [0, 0, 1, 1], [], []>} : vector<2x128xbf16>, vector<128x128xbf16>, vector<2x128xf32> -> vector<2x128xf32>
    %c0_73 = arith.constant 0 : index
    %c0_74 = arith.constant 0 : index
    %178 = vector.load %arg4[%c0_73, %c0_74] : memref<1x128xf32, #tpu.memory_space<vmem>>, vector<1x128xf32>
    %179 = vector.broadcast %178 : vector<1x128xf32> to vector<2x128xf32>
    %180 = arith.addf %177, %179 : vector<2x128xf32>
    %c0_75 = arith.constant 0 : index
    %c0_76 = arith.constant 0 : index
    %181 = vector.load %arg8[%c0_75, %c0_76] : memref<2x128xf32, #tpu.memory_space<vmem>>, vector<2x128xf32>
    tpu.vector_store %arg8[%c0_75, %c0_76], %180 {strides = array<i32>} : memref<2x128xf32, #tpu.memory_space<vmem>>, vector<2x128xf32>,
    %cst_77 = arith.constant 0.000000e+00 : f32
    %182 = vector.broadcast %cst_77 : f32 to vector<2x128xf32>
    %183 = arith.maximumf %180, %182 : vector<2x128xf32>
    %184 = arith.truncf %183 : vector<2x128xf32> to vector<2x128xbf16>
    %c0_78 = arith.constant 0 : index
    %c0_79 = arith.constant 0 : index
    %185 = vector.load %arg5[%c0_78, %c0_79] : memref<128x128xbf16, #tpu.memory_space<vmem>>, vector<128x128xbf16>
    %cst_80 = arith.constant dense<0.000000e+00> : vector<2x128xf32>
    %186 = tpu.matmul %184, %185, %cst_80 {dimension_numbers = #tpu.dot_dimension_numbers<[1], [0], [0], [1], [0, 0, 1, 1], [], []>} : vector<2x128xbf16>, vector<128x128xbf16>, vector<2x128xf32> -> vector<2x128xf32>
    %c0_81 = arith.constant 0 : index
    %c0_82 = arith.constant 0 : index
    %187 = vector.load %arg6[%c0_81, %c0_82] : memref<1x128xf32, #tpu.memory_space<vmem>>, vector<1x128xf32>
    %188 = vector.broadcast %187 : vector<1x128xf32> to vector<2x128xf32>
    %189 = arith.addf %186, %188 : vector<2x128xf32>
    %190 = tpu.iota {dimensions = array<i32: 1>} : vector<2x128xi32>
    %c16_i32_83 = arith.constant 16 : i32
    %191 = vector.broadcast %c16_i32_83 : i32 to vector<2x128xi32>
    %192 = arith.cmpi slt, %190, %191 : vector<2x128xi32>
    %cst_84 = arith.constant -1.000000e+30 : f32
    %193 = vector.broadcast %cst_84 : f32 to vector<2x128xf32>
    %194 = arith.select %192, %189, %193 : vector<2x128xi1>, vector<2x128xf32>
    %cst_85 = arith.constant dense<0xFF800000> : vector<2xf32>
    %195 = vector.multi_reduction <maximumf>, %194, %cst_85 [1] : vector<2x128xf32> to vector<2xf32>
    %196 = vector.shape_cast %195 : vector<2xf32> to vector<2x1xf32>
    %197 = vector.broadcast %196 : vector<2x1xf32> to vector<2x128xf32>
    %198 = arith.subf %194, %197 : vector<2x128xf32>
    %199 = math.exp %198 : vector<2x128xf32>
    %cst_86 = arith.constant dense<0.000000e+00> : vector<2xf32>
    %200 = vector.multi_reduction <add>, %199, %cst_86 [1] : vector<2x128xf32> to vector<2xf32>
    %201 = vector.shape_cast %200 : vector<2xf32> to vector<2x1xf32>
    %202 = tpu.reciprocal %201 {approx = true} : vector<2x1xf32> -> vector<2x1xf32>
    %203 = arith.mulf %201, %202 : vector<2x1xf32>
    %cst_87 = arith.constant 2.000000e+00 : f32
    %204 = vector.broadcast %cst_87 : f32 to vector<2x1xf32>
    %205 = arith.subf %204, %203 : vector<2x1xf32>
    %206 = arith.mulf %202, %205 : vector<2x1xf32>
    %207 = vector.broadcast %206 : vector<2x1xf32> to vector<2x128xf32>
    %208 = arith.mulf %199, %207 : vector<2x128xf32>
    %c0_88 = arith.constant 0 : index
    %c0_89 = arith.constant 0 : index
    %209 = vector.load %arg7[%c0_88, %c0_89] : memref<2x128xf32, #tpu.memory_space<vmem>>, vector<2x128xf32>
    tpu.vector_store %arg7[%c0_88, %c0_89], %208 {strides = array<i32>} : memref<2x128xf32, #tpu.memory_space<vmem>>, vector<2x128xf32>,
    return
  }
}

</mosaic_0001>

<llo_original>
// kernel: by_model_forward.1
$region0: #{by_model_forward.1}
  #allocation0 [shape = 'u32[]', space=smem, size = 0x4, offset = 0x4, fixed_abs, tag = 'smem constant byte address 0x4 - core index']
  #allocation1 [shape = 'u32[72,128]{1,0:T(1,128)}', space=vmem, size = 0x9000, scoped, tag = 'internal scratch']
  %s0 = inlined_call_operand.vmem [shape: f32[64,128], index: 0, kind: input, shape index: {}]
  %s1 = inlined_call_operand.hbm [shape: bf16[5,128,128], index: 1, kind: input, shape index: {}]
  %s2 = inlined_call_operand.vmem [shape: f32[5,1,128], index: 2, kind: input, shape index: {}]
  %s3 = inlined_call_operand.vmem [shape: bf16[128,128], index: 3, kind: input, shape index: {}]
  %s4 = inlined_call_operand.vmem [shape: f32[1,128], index: 4, kind: input, shape index: {}]
  %s5 = inlined_call_operand.vmem [shape: bf16[128,128], index: 5, kind: input, shape index: {}]
  %s6 = inlined_call_operand.vmem [shape: f32[1,128], index: 6, kind: input, shape index: {}]
  %s7 = inlined_call_operand.hbm [shape: f32[2,128], index: 7, kind: output, shape index: {0}]
  %s8 = inlined_call_operand.hbm [shape: f32[2,128], index: 8, kind: output, shape index: {1}]
  %9 = xla_tuple %s7, %s8
  %s10 = sld [smem:[#allocation0]]
  $region50: #{by_model_forward.1} parent=0
    _
  %s12 = ssub.s32 1, %s10
  %s13 = scalar_select 0, %s12, %s10
  $region1: #{by_model_forward.1} parent=0
    #allocation2 [shape = 'u8[163840]{0}', space=vmem, size = 0x28000, scoped, tag = 'input window, operand 1, single buffered']
    #allocation3 [shape = 's32[1]{0}', space=sflag, size = 0x4, scoped, tag = 'scoped memory for by_model_forward.1']
    #allocation4 [shape = 's32[1]{0}', space=sflag, size = 0x4, scoped, tag = 'scoped memory for by_model_forward.1']
    #allocation5 [shape = 'u8[1024]{0}', space=vmem, size = 0x400, scoped, tag = 'output window, operand 0, single buffered']
    #allocation6 [shape = 'u8[1024]{0}', space=vmem, size = 0x400, scoped, tag = 'output window, operand 1, single buffered']
    #allocation7 [shape = 's32[1]{0}', space=sflag, size = 0x4, scoped, tag = 'scoped memory for by_model_forward.1']
    %14 = vsyncpa [#allocation3], 0
    %15 = vsyncpa [#allocation4], 0
    %16 = vsyncpa [#allocation7], 0
    // Predicated region
    $region2: #{by_model_forward.1} parent=1 // pred_check
      _
    $region3: #{by_model_forward.1} parent=1 // pred_check_branch
      %18 = sbr.rel (0) target = $region5
    $region4: #{by_model_forward.1} parent=1 // pred_region
      _
    $region5: #{by_model_forward.1} parent=1 // pred_fallthru
      _
    // Predicated region
    $region6: #{by_model_forward.1} parent=1 // pred_check
      _
    $region7: #{by_model_forward.1} parent=1 // pred_check_branch
      %20 = sbr.rel (0) target = $region9
    $region8: #{by_model_forward.1} parent=1 // pred_region
      %22 = vsyncadd [#allocation3], 0
      %s23 = sshll.u32 %s1, 4
      %s24 = int_to_ptr.hbm [resolvable:$true] %s23
      %s25 = sshll.u32 [#allocation2], 4
      %s26 = int_to_ptr.vmem [resolvable:$true] %s25
      %31 = dma.hbm_to_vmem [thread:$0]  %s24, 5120, %s26, [#allocation3], 64, 64, 4
    $region9: #{by_model_forward.1} parent=1 // pred_fallthru
      _
    // Predicated region
    $region10: #{by_model_forward.1} parent=1 // pred_check
      _
    $region11: #{by_model_forward.1} parent=1 // pred_check_branch
      %33 = sbr.rel (0) target = $region13
    $region12: #{by_model_forward.1} parent=1 // pred_region
      _
    $region13: #{by_model_forward.1} parent=1 // pred_fallthru
      _
    // Predicated region
    $region14: #{by_model_forward.1} parent=1 // pred_check
      _
    $region15: #{by_model_forward.1} parent=1 // pred_check_branch
      %35 = sbr.rel (0) target = $region17
    $region16: #{by_model_forward.1} parent=1 // pred_region
      _
    $region17: #{by_model_forward.1} parent=1 // pred_fallthru
      _
    // Predicated region
    $region18: #{by_model_forward.1} parent=1 // pred_check
      _
    $region19: #{by_model_forward.1} parent=1 // pred_check_branch
      %37 = sbr.rel (0) target = $region21
    $region20: #{by_model_forward.1} parent=1 // pred_region
      _
    $region21: #{by_model_forward.1} parent=1 // pred_fallthru
      _
    // Predicated region
    $region22: #{by_model_forward.1} parent=1 // pred_check
      _
    $region23: #{by_model_forward.1} parent=1 // pred_check_branch
      %39 = sbr.rel (0) target = $region25
    $region24: #{by_model_forward.1} parent=1 // pred_region
      _
    $region25: #{by_model_forward.1} parent=1 // pred_fallthru
      _
    // Predicated region
    $region26: #{by_model_forward.1} parent=1 // pred_check
      _
    $region27: #{by_model_forward.1} parent=1 // pred_check_branch
      %41 = sbr.rel (0) target = $region29
    $region28: #{by_model_forward.1} parent=1 // pred_region
      _
    $region29: #{by_model_forward.1} parent=1 // pred_fallthru
      _
    // Predicated region
    $region30: #{by_model_forward.1} parent=1 // pred_check
      _
    $region31: #{by_model_forward.1} parent=1 // pred_check_branch
      %43 = sbr.rel (0) target = $region33
    $region32: #{by_model_forward.1} parent=1 // pred_region
      %45 = dma.done [#allocation3], 5120
    $region33: #{by_model_forward.1} parent=1 // pred_fallthru
      _
    %v46 = vld [vmem:[%s0] sm:$0xff]
    %v47 = vld [vmem:[%s0 + $0x8] sm:$0xff]
    %v48 = vld [vmem:[%s0 + $0x10] sm:$0xff]
    %v49 = vld [vmem:[%s0 + $0x18] sm:$0xff]
    %v50 = vld [vmem:[%s0 + $0x20] sm:$0xff]
    %v51 = vld [vmem:[%s0 + $0x28] sm:$0xff]
    %v52 = vld [vmem:[%s0 + $0x30] sm:$0xff]
    %v53 = vld [vmem:[%s0 + $0x38] sm:$0xff]
    %v54 = vlaneseq
    %v55 = vshrl.u32 %v54, 7
    %v56 = vadd.s32 %v55, 8
    %v57 = vadd.s32 %v55, 16
    %v58 = vadd.s32 %v55, 24
    %v59 = vadd.s32 %v55, 32
    %v60 = vadd.s32 %v55, 40
    %v61 = vadd.s32 %v55, 48
    %v62 = vadd.s32 %v55, 56
    %vm63 = vcmp.lt.s32.totalorder %v55, 0
    %v64 = vsub.s32 0, %v55
    %v65 = vsel %vm63, %v64, %v55
    %v66 = vshrl.u32 %v65, 5
    %v67 = vand.u32 %v65, 31
    %v68 = vsub.s32 0, %v67
    %v69 = vsel %vm63, %v68, %v67
    %vm70 = vcmp.lt.s32.totalorder %v56, 0
    %v71 = vsub.s32 0, %v56
    %v72 = vsel %vm70, %v71, %v56
    %v73 = vshrl.u32 %v72, 5
    %v74 = vand.u32 %v72, 31
    %v75 = vsub.s32 0, %v74
    %v76 = vsel %vm70, %v75, %v74
    %vm77 = vcmp.lt.s32.totalorder %v57, 0
    %v78 = vsub.s32 0, %v57
    %v79 = vsel %vm77, %v78, %v57
    %v80 = vshrl.u32 %v79, 5
    %v81 = vand.u32 %v79, 31
    %v82 = vsub.s32 0, %v81
    %v83 = vsel %vm77, %v82, %v81
    %vm84 = vcmp.lt.s32.totalorder %v58, 0
    %v85 = vsub.s32 0, %v58
    %v86 = vsel %vm84, %v85, %v58
    %v87 = vshrl.u32 %v86, 5
    %v88 = vand.u32 %v86, 31
    %v89 = vsub.s32 0, %v88
    %v90 = vsel %vm84, %v89, %v88
    %vm91 = vcmp.lt.s32.totalorder %v59, 0
    %v92 = vsub.s32 0, %v59
    %v93 = vsel %vm91, %v92, %v59
    %v94 = vshrl.u32 %v93, 5
    %v95 = vand.u32 %v93, 31
    %v96 = vsub.s32 0, %v95
    %v97 = vsel %vm91, %v96, %v95
    %vm98 = vcmp.lt.s32.totalorder %v60, 0
    %v99 = vsub.s32 0, %v60
    %v100 = vsel %vm98, %v99, %v60
    %v101 = vshrl.u32 %v100, 5
    %v102 = vand.u32 %v100, 31
    %v103 = vsub.s32 0, %v102
    %v104 = vsel %vm98, %v103, %v102
    %vm105 = vcmp.lt.s32.totalorder %v61, 0
    %v106 = vsub.s32 0, %v61
    %v107 = vsel %vm105, %v106, %v61
    %v108 = vshrl.u32 %v107, 5
    %v109 = vand.u32 %v107, 31
    %v110 = vsub.s32 0, %v109
    %v111 = vsel %vm105, %v110, %v109
    %vm112 = vcmp.lt.s32.totalorder %v62, 0
    %v113 = vsub.s32 0, %v62
    %v114 = vsel %vm112, %v113, %v62
    %v115 = vshrl.u32 %v114, 5
    %v116 = vand.u32 %v114, 31
    %v117 = vsub.s32 0, %v116
    %v118 = vsel %vm112, %v117, %v116
    %vm119 = vcmp.ne.s32.totalorder %v69, 0
    %vm120 = vcmp.ne.s32.totalorder %v76, 0
    %vm121 = vcmp.ne.s32.totalorder %v83, 0
    %vm122 = vcmp.ne.s32.totalorder %v90, 0
    %vm123 = vcmp.ne.s32.totalorder %v97, 0
    %vm124 = vcmp.ne.s32.totalorder %v104, 0
    %vm125 = vcmp.ne.s32.totalorder %v111, 0
    %vm126 = vcmp.ne.s32.totalorder %v118, 0
    %vm127 = vcmp.lt.s32.totalorder %v69, 0
    %vm128 = vcmp.lt.s32.totalorder %v76, 0
    %vm129 = vcmp.lt.s32.totalorder %v83, 0
    %vm130 = vcmp.lt.s32.totalorder %v90, 0
    %vm131 = vcmp.lt.s32.totalorder %v97, 0
    %vm132 = vcmp.lt.s32.totalorder %v104, 0
    %vm133 = vcmp.lt.s32.totalorder %v111, 0
    %vm134 = vcmp.lt.s32.totalorder %v118, 0
    %vm135 = vmand %vm127, %vm119
    %vm136 = vmand %vm128, %vm120
    %vm137 = vmand %vm129, %vm121
    %vm138 = vmand %vm130, %vm122
    %vm139 = vmand %vm131, %vm123
    %vm140 = vmand %vm132, %vm124
    %vm141 = vmand %vm133, %vm125
    %vm142 = vmand %vm134, %vm126
    %v143 = vadd.s32 %v69, 32
    %v144 = vadd.s32 %v76, 32
    %v145 = vadd.s32 %v83, 32
    %v146 = vadd.s32 %v90, 32
    %v147 = vadd.s32 %v97, 32
    %v148 = vadd.s32 %v104, 32
    %v149 = vadd.s32 %v111, 32
    %v150 = vadd.s32 %v118, 32
    %v151 = vsel %vm135, %v143, %v69
    %v152 = vsel %vm136, %v144, %v76
    %v153 = vsel %vm137, %v145, %v83
    %v154 = vsel %vm138, %v146, %v90
    %v155 = vsel %vm139, %v147, %v97
    %v156 = vsel %vm140, %v148, %v104
    %v157 = vsel %vm141, %v149, %v111
    %v158 = vsel %vm142, %v150, %v118
    %v159 = vadd.s32 %v151, 4294967294
    %v160 = vadd.s32 %v152, 4294967294
    %v161 = vadd.s32 %v153, 4294967294
    %v162 = vadd.s32 %v154, 4294967294
    %v163 = vadd.s32 %v155, 4294967294
    %v164 = vadd.s32 %v156, 4294967294
    %v165 = vadd.s32 %v157, 4294967294
    %v166 = vadd.s32 %v158, 4294967294
    %vm167 = vcmp.ge.s32.totalorder %v159, 0
    %vm168 = vcmp.ge.s32.totalorder %v160, 0
    %vm169 = vcmp.ge.s32.totalorder %v161, 0
    %vm170 = vcmp.ge.s32.totalorder %v162, 0
    %vm171 = vcmp.ge.s32.totalorder %v163, 0
    %vm172 = vcmp.ge.s32.totalorder %v164, 0
    %vm173 = vcmp.ge.s32.totalorder %v165, 0
    %vm174 = vcmp.ge.s32.totalorder %v166, 0
    %vm175 = vcmp.lt.s32.totalorder %v159, 32
    %vm176 = vcmp.lt.s32.totalorder %v160, 32
    %vm177 = vcmp.lt.s32.totalorder %v161, 32
    %vm178 = vcmp.lt.s32.totalorder %v162, 32
    %vm179 = vcmp.lt.s32.totalorder %v163, 32
    %vm180 = vcmp.lt.s32.totalorder %v164, 32
    %vm181 = vcmp.lt.s32.totalorder %v165, 32
    %vm182 = vcmp.lt.s32.totalorder %v166, 32
    %vm183 = vmand %vm167, %vm175
    %vm184 = vmand %vm168, %vm176
    %vm185 = vmand %vm169, %vm177
    %vm186 = vmand %vm170, %vm178
    %vm187 = vmand %vm171, %vm179
    %vm188 = vmand %vm172, %vm180
    %vm189 = vmand %vm173, %vm181
    %vm190 = vmand %vm174, %vm182
    %v191 = vsel %vm183, 1, 0
    %v192 = vsel %vm184, 1, 0
    %v193 = vsel %vm185, 1, 0
    %v194 = vsel %vm186, 1, 0
    %v195 = vsel %vm187, 1, 0
    %v196 = vsel %vm188, 1, 0
    %v197 = vsel %vm189, 1, 0
    %v198 = vsel %vm190, 1, 0
    %v199 = vcvt.s32.f32 %v191
    %v200 = vcvt.s32.f32 %v192
    %v201 = vcvt.s32.f32 %v193
    %v202 = vcvt.s32.f32 %v194
    %v203 = vcvt.s32.f32 %v195
    %v204 = vcvt.s32.f32 %v196
    %v205 = vcvt.s32.f32 %v197
    %v206 = vcvt.s32.f32 %v198
    %v207 = vadd.s32 %v151, 4294967295
    %v208 = vadd.s32 %v152, 4294967295
    %v209 = vadd.s32 %v153, 4294967295
    %v210 = vadd.s32 %v154, 4294967295
    %v211 = vadd.s32 %v155, 4294967295
    %v212 = vadd.s32 %v156, 4294967295
    %v213 = vadd.s32 %v157, 4294967295
    %v214 = vadd.s32 %v158, 4294967295
    %vm215 = vcmp.ge.s32.totalorder %v207, 0
    %vm216 = vcmp.ge.s32.totalorder %v208, 0
    %vm217 = vcmp.ge.s32.totalorder %v209, 0
    %vm218 = vcmp.ge.s32.totalorder %v210, 0
    %vm219 = vcmp.ge.s32.totalorder %v211, 0
    %vm220 = vcmp.ge.s32.totalorder %v212, 0
    %vm221 = vcmp.ge.s32.totalorder %v213, 0
    %vm222 = vcmp.ge.s32.totalorder %v214, 0
    %vm223 = vcmp.lt.s32.totalorder %v207, 32
    %vm224 = vcmp.lt.s32.totalorder %v208, 32
    %vm225 = vcmp.lt.s32.totalorder %v209, 32
    %vm226 = vcmp.lt.s32.totalorder %v210, 32
    %vm227 = vcmp.lt.s32.totalorder %v211, 32
    %vm228 = vcmp.lt.s32.totalorder %v212, 32
    %vm229 = vcmp.lt.s32.totalorder %v213, 32
    %vm230 = vcmp.lt.s32.totalorder %v214, 32
    %vm231 = vmand %vm215, %vm223
    %vm232 = vmand %vm216, %vm224
    %vm233 = vmand %vm217, %vm225
    %vm234 = vmand %vm218, %vm226
    %vm235 = vmand %vm219, %vm227
    %vm236 = vmand %vm220, %vm228
    %vm237 = vmand %vm221, %vm229
    %vm238 = vmand %vm222, %vm230
    %v239 = vsel %vm231, 1, 0
    %v240 = vsel %vm232, 1, 0
    %v241 = vsel %vm233, 1, 0
    %v242 = vsel %vm234, 1, 0
    %v243 = vsel %vm235, 1, 0
    %v244 = vsel %vm236, 1, 0
    %v245 = vsel %vm237, 1, 0
    %v246 = vsel %vm238, 1, 0
    %v247 = vcvt.s32.f32 %v239
    %v248 = vcvt.s32.f32 %v240
    %v249 = vcvt.s32.f32 %v241
    %v250 = vcvt.s32.f32 %v242
    %v251 = vcvt.s32.f32 %v243
    %v252 = vcvt.s32.f32 %v244
    %v253 = vcvt.s32.f32 %v245
    %v254 = vcvt.s32.f32 %v246
    %v255 = vadd.s32 %v151, 1
    %v256 = vadd.s32 %v152, 1
    %v257 = vadd.s32 %v153, 1
    %v258 = vadd.s32 %v154, 1
    %v259 = vadd.s32 %v155, 1
    %v260 = vadd.s32 %v156, 1
    %v261 = vadd.s32 %v157, 1
    %v262 = vadd.s32 %v158, 1
    %vm263 = vcmp.ge.s32.totalorder %v255, 0
    %vm264 = vcmp.ge.s32.totalorder %v256, 0
    %vm265 = vcmp.ge.s32.totalorder %v257, 0
    %vm266 = vcmp.ge.s32.totalorder %v258, 0
    %vm267 = vcmp.ge.s32.totalorder %v259, 0
    %vm268 = vcmp.ge.s32.totalorder %v260, 0
    %vm269 = vcmp.ge.s32.totalorder %v261, 0
    %vm270 = vcmp.ge.s32.totalorder %v262, 0
    %vm271 = vcmp.lt.s32.totalorder %v255, 32
    %vm272 = vcmp.lt.s32.totalorder %v256, 32
    %vm273 = vcmp.lt.s32.totalorder %v257, 32
    %vm274 = vcmp.lt.s32.totalorder %v258, 32
    %vm275 = vcmp.lt.s32.totalorder %v259, 32
    %vm276 = vcmp.lt.s32.totalorder %v260, 32
    %vm277 = vcmp.lt.s32.totalorder %v261, 32
    %vm278 = vcmp.lt.s32.totalorder %v262, 32
    %vm279 = vmand %vm263, %vm271
    %vm280 = vmand %vm264, %vm272
    %vm281 = vmand %vm265, %vm273
    %vm282 = vmand %vm266, %vm274
    %vm283 = vmand %vm267, %vm275
    %vm284 = vmand %vm268, %vm276
    %vm285 = vmand %vm269, %vm277
    %vm286 = vmand %vm270, %vm278
    %v287 = vsel %vm279, 1, 0
    %v288 = vsel %vm280, 1, 0
    %v289 = vsel %vm281, 1, 0
    %v290 = vsel %vm282, 1, 0
    %v291 = vsel %vm283, 1, 0
    %v292 = vsel %vm284, 1, 0
    %v293 = vsel %vm285, 1, 0
    %v294 = vsel %vm286, 1, 0
    %v295 = vcvt.s32.f32 %v287
    %v296 = vcvt.s32.f32 %v288
    %v297 = vcvt.s32.f32 %v289
    %v298 = vcvt.s32.f32 %v290
    %v299 = vcvt.s32.f32 %v291
    %v300 = vcvt.s32.f32 %v292
    %v301 = vcvt.s32.f32 %v293
    %v302 = vcvt.s32.f32 %v294
    %v303 = vadd.s32 %v151, 2
    %v304 = vadd.s32 %v152, 2
    %v305 = vadd.s32 %v153, 2
    %v306 = vadd.s32 %v154, 2
    %v307 = vadd.s32 %v155, 2
    %v308 = vadd.s32 %v156, 2
    %v309 = vadd.s32 %v157, 2
    %v310 = vadd.s32 %v158, 2
    %vm311 = vcmp.ge.s32.totalorder %v303, 0
    %vm312 = vcmp.ge.s32.totalorder %v304, 0
    %vm313 = vcmp.ge.s32.totalorder %v305, 0
    %vm314 = vcmp.ge.s32.totalorder %v306, 0
    %vm315 = vcmp.ge.s32.totalorder %v307, 0
    %vm316 = vcmp.ge.s32.totalorder %v308, 0
    %vm317 = vcmp.ge.s32.totalorder %v309, 0
    %vm318 = vcmp.ge.s32.totalorder %v310, 0
    %vm319 = vcmp.lt.s32.totalorder %v303, 32
    %vm320 = vcmp.lt.s32.totalorder %v304, 32
    %vm321 = vcmp.lt.s32.totalorder %v305, 32
    %vm322 = vcmp.lt.s32.totalorder %v306, 32
    %vm323 = vcmp.lt.s32.totalorder %v307, 32
    %vm324 = vcmp.lt.s32.totalorder %v308, 32
    %vm325 = vcmp.lt.s32.totalorder %v309, 32
    %vm326 = vcmp.lt.s32.totalorder %v310, 32
    %vm327 = vmand %vm311, %vm319
    %vm328 = vmand %vm312, %vm320
    %vm329 = vmand %vm313, %vm321
    %vm330 = vmand %vm314, %vm322
    %vm331 = vmand %vm315, %vm323
    %vm332 = vmand %vm316, %vm324
    %vm333 = vmand %vm317, %vm325
    %vm334 = vmand %vm318, %vm326
    %v335 = vsel %vm327, 1, 0
    %v336 = vsel %vm328, 1, 0
    %v337 = vsel %vm329, 1, 0
    %v338 = vsel %vm330, 1, 0
    %v339 = vsel %vm331, 1, 0
    %v340 = vsel %vm332, 1, 0
    %v341 = vsel %vm333, 1, 0
    %v342 = vsel %vm334, 1, 0
    %v343 = vcvt.s32.f32 %v335
    %v344 = vcvt.s32.f32 %v336
    %v345 = vcvt.s32.f32 %v337
    %v346 = vcvt.s32.f32 %v338
    %v347 = vcvt.s32.f32 %v339
    %v348 = vcvt.s32.f32 %v340
    %v349 = vcvt.s32.f32 %v341
    %v350 = vcvt.s32.f32 %v342
    %v351 = vrot.slane %v46, 6
    %v352 = vrot.slane %v47, 6
    %v353 = vrot.slane %v48, 6
    %v354 = vrot.slane %v49, 6
    %v355 = vrot.slane %v50, 6
    %v356 = vrot.slane %v51, 6
    %v357 = vrot.slane %v52, 6
    %v358 = vrot.slane %v53, 6
    %vm359 = vcmp.lt.s32.totalorder %v55, 2
    %v360 = vsel %vm359, %v357, %v358
    %v361 = vsel %vm359, %v356, %v357
    %v362 = vsel %vm359, %v355, %v356
    %v363 = vsel %vm359, %v354, %v355
    %v364 = vsel %vm359, %v353, %v354
    %v365 = vsel %vm359, %v352, %v353
    %v366 = vsel %vm359, %v351, %v352
    %v367 = vsel %vm359, %v358, %v351
    %v368 = vmul.f32 %v367, %v199
    %v369 = vmul.f32 %v366, %v200
    %v370 = vmul.f32 %v365, %v201
    %v371 = vmul.f32 %v364, %v202
    %v372 = vmul.f32 %v363, %v203
    %v373 = vmul.f32 %v362, %v204
    %v374 = vmul.f32 %v361, %v205
    %v375 = vmul.f32 %v360, %v206
    %v376 = vadd.f32 %v368, 0.0
    %v377 = vadd.f32 %v369, 0.0
    %v378 = vadd.f32 %v370, 0.0
    %v379 = vadd.f32 %v371, 0.0
    %v380 = vadd.f32 %v372, 0.0
    %v381 = vadd.f32 %v373, 0.0
    %v382 = vadd.f32 %v374, 0.0
    %v383 = vadd.f32 %v375, 0.0
    %v384 = vrot.slane %v46, 7
    %v385 = vrot.slane %v47, 7
    %v386 = vrot.slane %v48, 7
    %v387 = vrot.slane %v49, 7
    %v388 = vrot.slane %v50, 7
    %v389 = vrot.slane %v51, 7
    %v390 = vrot.slane %v52, 7
    %v391 = vrot.slane %v53, 7
    %vm392 = vcmp.lt.s32.totalorder %v55, 1
    %v393 = vsel %vm392, %v390, %v391
    %v394 = vsel %vm392, %v389, %v390
    %v395 = vsel %vm392, %v388, %v389
    %v396 = vsel %vm392, %v387, %v388
    %v397 = vsel %vm392, %v386, %v387
    %v398 = vsel %vm392, %v385, %v386
    %v399 = vsel %vm392, %v384, %v385
    %v400 = vsel %vm392, %v391, %v384
    %v401 = vmul.f32 %v400, %v247
    %v402 = vmul.f32 %v399, %v248
    %v403 = vmul.f32 %v398, %v249
    %v404 = vmul.f32 %v397, %v250
    %v405 = vmul.f32 %v396, %v251
    %v406 = vmul.f32 %v395, %v252
    %v407 = vmul.f32 %v394, %v253
    %v408 = vmul.f32 %v393, %v254
    %409 = vrot.lane.b32.xlu0 %v401, 8
    %v410 = vpop.permute.xlu0 %409
    %411 = vrot.lane.b32.xlu0 %v402, 8
    %v412 = vpop.permute.xlu0 %411
    %413 = vrot.lane.b32.xlu0 %v403, 8
    %v414 = vpop.permute.xlu0 %413
    %415 = vrot.lane.b32.xlu0 %v404, 8
    %v416 = vpop.permute.xlu0 %415
    %417 = vrot.lane.b32.xlu0 %v405, 8
    %v418 = vpop.permute.xlu0 %417
    %419 = vrot.lane.b32.xlu0 %v406, 8
    %v420 = vpop.permute.xlu0 %419
    %421 = vrot.lane.b32.xlu0 %v407, 8
    %v422 = vpop.permute.xlu0 %421
    %423 = vrot.lane.b32.xlu0 %v408, 8
    %v424 = vpop.permute.xlu0 %423
    %v425 = vadd.f32 %v376, %v410
    %v426 = vadd.f32 %v377, %v412
    %v427 = vadd.f32 %v378, %v414
    %v428 = vadd.f32 %v379, %v416
    %v429 = vadd.f32 %v380, %v418
    %v430 = vadd.f32 %v381, %v420
    %v431 = vadd.f32 %v382, %v422
    %v432 = vadd.f32 %v383, %v424
    %433 = vrot.lane.b32.xlu0 %v46, 16
    %v434 = vpop.permute.xlu0 %433
    %435 = vrot.lane.b32.xlu0 %v47, 16
    %v436 = vpop.permute.xlu0 %435
    %437 = vrot.lane.b32.xlu0 %v48, 16
    %v438 = vpop.permute.xlu0 %437
    %439 = vrot.lane.b32.xlu0 %v49, 16
    %v440 = vpop.permute.xlu0 %439
    %441 = vrot.lane.b32.xlu0 %v50, 16
    %v442 = vpop.permute.xlu0 %441
    %443 = vrot.lane.b32.xlu0 %v51, 16
    %v444 = vpop.permute.xlu0 %443
    %445 = vrot.lane.b32.xlu0 %v52, 16
    %v446 = vpop.permute.xlu0 %445
    %447 = vrot.lane.b32.xlu0 %v53, 16
    %v448 = vpop.permute.xlu0 %447
    %v449 = vadd.f32 %v425, %v434
    %v450 = vadd.f32 %v426, %v436
    %v451 = vadd.f32 %v427, %v438
    %v452 = vadd.f32 %v428, %v440
    %v453 = vadd.f32 %v429, %v442
    %v454 = vadd.f32 %v430, %v444
    %v455 = vadd.f32 %v431, %v446
    %v456 = vadd.f32 %v432, %v448
    %v457 = vrot.slane %v46, 1
    %v458 = vrot.slane %v47, 1
    %v459 = vrot.slane %v48, 1
    %v460 = vrot.slane %v49, 1
    %v461 = vrot.slane %v50, 1
    %v462 = vrot.slane %v51, 1
    %v463 = vrot.slane %v52, 1
    %v464 = vrot.slane %v53, 1
    %vm465 = vcmp.lt.s32.totalorder %v55, 7
    %v466 = vsel %vm465, %v463, %v464
    %v467 = vsel %vm465, %v462, %v463
    %v468 = vsel %vm465, %v461, %v462
    %v469 = vsel %vm465, %v460, %v461
    %v470 = vsel %vm465, %v459, %v460
    %v471 = vsel %vm465, %v458, %v459
    %v472 = vsel %vm465, %v457, %v458
    %v473 = vsel %vm465, %v464, %v457
    %v474 = vmul.f32 %v472, %v295
    %v475 = vmul.f32 %v471, %v296
    %v476 = vmul.f32 %v470, %v297
    %v477 = vmul.f32 %v469, %v298
    %v478 = vmul.f32 %v468, %v299
    %v479 = vmul.f32 %v467, %v300
    %v480 = vmul.f32 %v466, %v301
    %v481 = vmul.f32 %v473, %v302
    %482 = vrot.lane.b32.xlu0 %v474, 24
    %v483 = vpop.permute.xlu0 %482
    %484 = vrot.lane.b32.xlu0 %v475, 24
    %v485 = vpop.permute.xlu0 %484
    %486 = vrot.lane.b32.xlu0 %v476, 24
    %v487 = vpop.permute.xlu0 %486
    %488 = vrot.lane.b32.xlu0 %v477, 24
    %v489 = vpop.permute.xlu0 %488
    %490 = vrot.lane.b32.xlu0 %v478, 24
    %v491 = vpop.permute.xlu0 %490
    %492 = vrot.lane.b32.xlu0 %v479, 24
    %v493 = vpop.permute.xlu0 %492
    %494 = vrot.lane.b32.xlu0 %v480, 24
    %v495 = vpop.permute.xlu0 %494
    %496 = vrot.lane.b32.xlu0 %v481, 24
    %v497 = vpop.permute.xlu0 %496
    %v498 = vadd.f32 %v449, %v483
    %v499 = vadd.f32 %v450, %v485
    %v500 = vadd.f32 %v451, %v487
    %v501 = vadd.f32 %v452, %v489
    %v502 = vadd.f32 %v453, %v491
    %v503 = vadd.f32 %v454, %v493
    %v504 = vadd.f32 %v455, %v495
    %v505 = vadd.f32 %v456, %v497
    %v506 = vrot.slane %v46, 2
    %v507 = vrot.slane %v47, 2
    %v508 = vrot.slane %v48, 2
    %v509 = vrot.slane %v49, 2
    %v510 = vrot.slane %v50, 2
    %v511 = vrot.slane %v51, 2
    %v512 = vrot.slane %v52, 2
    %v513 = vrot.slane %v53, 2
    %vm514 = vcmp.lt.s32.totalorder %v55, 6
    %v515 = vsel %vm514, %v512, %v513
    %v516 = vsel %vm514, %v511, %v512
    %v517 = vsel %vm514, %v510, %v511
    %v518 = vsel %vm514, %v509, %v510
    %v519 = vsel %vm514, %v508, %v509
    %v520 = vsel %vm514, %v507, %v508
    %v521 = vsel %vm514, %v506, %v507
    %v522 = vsel %vm514, %v513, %v506
    %v523 = vmul.f32 %v521, %v343
    %v524 = vmul.f32 %v520, %v344
    %v525 = vmul.f32 %v519, %v345
    %v526 = vmul.f32 %v518, %v346
    %v527 = vmul.f32 %v517, %v347
    %v528 = vmul.f32 %v516, %v348
    %v529 = vmul.f32 %v515, %v349
    %v530 = vmul.f32 %v522, %v350
    %531 = vrot.lane.b32.xlu0 %v523, 32
    %v532 = vpop.permute.xlu0 %531
    %533 = vrot.lane.b32.xlu0 %v524, 32
    %v534 = vpop.permute.xlu0 %533
    %535 = vrot.lane.b32.xlu0 %v525, 32
    %v536 = vpop.permute.xlu0 %535
    %537 = vrot.lane.b32.xlu0 %v526, 32
    %v538 = vpop.permute.xlu0 %537
    %539 = vrot.lane.b32.xlu0 %v527, 32
    %v540 = vpop.permute.xlu0 %539
    %541 = vrot.lane.b32.xlu0 %v528, 32
    %v542 = vpop.permute.xlu0 %541
    %543 = vrot.lane.b32.xlu0 %v529, 32
    %v544 = vpop.permute.xlu0 %543
    %545 = vrot.lane.b32.xlu0 %v530, 32
    %v546 = vpop.permute.xlu0 %545
    %v547 = vadd.f32 %v498, %v532
    %v548 = vadd.f32 %v499, %v534
    %v549 = vadd.f32 %v500, %v536
    %v550 = vadd.f32 %v501, %v538
    %v551 = vadd.f32 %v502, %v540
    %v552 = vadd.f32 %v503, %v542
    %v553 = vadd.f32 %v504, %v544
    %v554 = vadd.f32 %v505, %v546
    %v555 = vpack.c.bf16 %v548, %v547
    %v556 = vpack.c.bf16 %v550, %v549
    %v557 = vpack.c.bf16 %v552, %v551
    %v558 = vpack.c.bf16 %v554, %v553
    %v559 = vld [vmem:[#allocation2] sm:$0xf]
    %v560 = vld [vmem:[#allocation2 + $0x4] sm:$0xf]
    %v561 = vld [vmem:[#allocation2 + $0x8] sm:$0xf]
    %v562 = vld [vmem:[#allocation2 + $0xc] sm:$0xf]
    %v563 = vld [vmem:[#allocation2 + $0x10] sm:$0xf]
    %v564 = vld [vmem:[#allocation2 + $0x14] sm:$0xf]
    %v565 = vld [vmem:[#allocation2 + $0x18] sm:$0xf]
    %v566 = vld [vmem:[#allocation2 + $0x1c] sm:$0xf]
    %v567 = vld [vmem:[#allocation2 + $0x20] sm:$0xf]
    %v568 = vld [vmem:[#allocation2 + $0x24] sm:$0xf]
    %v569 = vld [vmem:[#allocation2 + $0x28] sm:$0xf]
    %v570 = vld [vmem:[#allocation2 + $0x2c] sm:$0xf]
    %v571 = vld [vmem:[#allocation2 + $0x30] sm:$0xf]
    %v572 = vld [vmem:[#allocation2 + $0x34] sm:$0xf]
    %v573 = vld [vmem:[#allocation2 + $0x38] sm:$0xf]
    %v574 = vld [vmem:[#allocation2 + $0x3c] sm:$0xf]
    %v575 = vld [vmem:[%s2] sm:$0x1]
    %v577 = vperm.slane %v575, 0
    %v595 = vunpack.c.l.b16 %v559
    %v596 = vunpack.c.l.b16 %v560
    %v597 = vunpack.c.l.b16 %v561
    %v598 = vunpack.c.l.b16 %v562
    %v599 = vunpack.c.l.b16 %v563
    %v600 = vunpack.c.l.b16 %v564
    %v601 = vunpack.c.l.b16 %v565
    %v602 = vunpack.c.l.b16 %v566
    %v603 = vunpack.c.l.b16 %v567
    %v604 = vunpack.c.l.b16 %v568
    %v605 = vunpack.c.l.b16 %v569
    %v606 = vunpack.c.l.b16 %v570
    %v607 = vunpack.c.l.b16 %v571
    %v608 = vunpack.c.l.b16 %v572
    %v609 = vunpack.c.l.b16 %v573
    %v610 = vunpack.c.l.b16 %v574
    %v611 = vpack.c.b16 %v596, %v595
    %v612 = vpack.c.b16 %v598, %v597
    %v613 = vpack.c.b16 %v600, %v599
    %v614 = vpack.c.b16 %v602, %v601
    %v615 = vpack.c.b16 %v604, %v603
    %v616 = vpack.c.b16 %v606, %v605
    %v617 = vpack.c.b16 %v608, %v607
    %v618 = vpack.c.b16 %v610, %v609
    %627 = vmatpush.bf16.msra.mxu0 %v618
    %628 = vmatpush.bf16.msra.mxu0 %v617
    %629 = vmatpush.bf16.msra.mxu0 %v616
    %630 = vmatpush.bf16.msra.mxu0 %v615
    %631 = vmatpush.bf16.msra.mxu0 %v614
    %632 = vmatpush.bf16.msra.mxu0 %v613
    %633 = vmatpush.bf16.msra.mxu0 %v612
    %634 = vmatpush.bf16.msra.mxu0 %v611
    %635 = vmatmul.bf16.gmra.mxu0 %v555
    %v636 = vpop.f32.mrf.mxu0
    %v637 = vadd.f32 %v577, %v636
    %v638 = vpop.f32.mrf.mxu0
    %v639 = vadd.f32 %v577, %v638
    %640 = vmatmul.bf16.gmra.mxu0 %v556
    %v641 = vpop.f32.mrf.mxu0
    %v642 = vadd.f32 %v577, %v641
    %v643 = vpop.f32.mrf.mxu0
    %v644 = vadd.f32 %v577, %v643
    %645 = vmatmul.bf16.gmra.mxu0 %v557
    %v646 = vpop.f32.mrf.mxu0
    %v647 = vadd.f32 %v577, %v646
    %v648 = vpop.f32.mrf.mxu0
    %v649 = vadd.f32 %v577, %v648
    %650 = vmatmul.bf16.gmra.mxu0 %v558
    %v651 = vpop.f32.mrf.mxu0
    %v652 = vadd.f32 %v577, %v651
    %v653 = vpop.f32.mrf.mxu0
    %v654 = vadd.f32 %v577, %v653
    %655 = vdwg.mxu0
    %v656 = vmax.f32 %v637, 0.0
    %v657 = vmax.f32 %v639, 0.0
    %v658 = vmax.f32 %v642, 0.0
    %v659 = vmax.f32 %v644, 0.0
    %v660 = vmax.f32 %v647, 0.0
    %v661 = vmax.f32 %v649, 0.0
    %v662 = vmax.f32 %v652, 0.0
    %v663 = vmax.f32 %v654, 0.0
    %v664 = vrot.slane %v656, 7
    %v665 = vrot.slane %v657, 7
    %v666 = vrot.slane %v658, 7
    %v667 = vrot.slane %v659, 7
    %v668 = vrot.slane %v660, 7
    %v669 = vrot.slane %v661, 7
    %v670 = vrot.slane %v662, 7
    %v671 = vrot.slane %v663, 7
    %v672 = vsel %vm392, %v670, %v671
    %v673 = vsel %vm392, %v669, %v670
    %v674 = vsel %vm392, %v668, %v669
    %v675 = vsel %vm392, %v667, %v668
    %v676 = vsel %vm392, %v666, %v667
    %v677 = vsel %vm392, %v665, %v666
    %v678 = vsel %vm392, %v664, %v665
    %v679 = vsel %vm392, %v671, %v664
    %v680 = vmul.f32 %v679, %v247
    %v681 = vmul.f32 %v678, %v248
    %v682 = vmul.f32 %v677, %v249
    %v683 = vmul.f32 %v676, %v250
    %v684 = vmul.f32 %v675, %v251
    %v685 = vmul.f32 %v674, %v252
    %v686 = vmul.f32 %v673, %v253
    %v687 = vmul.f32 %v672, %v254
    %v688 = vadd.f32 %v680, 0.0
    %v689 = vadd.f32 %v681, 0.0
    %v690 = vadd.f32 %v682, 0.0
    %v691 = vadd.f32 %v683, 0.0
    %v692 = vadd.f32 %v684, 0.0
    %v693 = vadd.f32 %v685, 0.0
    %v694 = vadd.f32 %v686, 0.0
    %v695 = vadd.f32 %v687, 0.0
    %696 = vrot.lane.b32.xlu0 %v656, 32
    %v697 = vpop.permute.xlu0 %696
    %698 = vrot.lane.b32.xlu0 %v657, 32
    %v699 = vpop.permute.xlu0 %698
    %700 = vrot.lane.b32.xlu0 %v658, 32
    %v701 = vpop.permute.xlu0 %700
    %702 = vrot.lane.b32.xlu0 %v659, 32
    %v703 = vpop.permute.xlu0 %702
    %704 = vrot.lane.b32.xlu0 %v660, 32
    %v705 = vpop.permute.xlu0 %704
    %706 = vrot.lane.b32.xlu0 %v661, 32
    %v707 = vpop.permute.xlu0 %706
    %708 = vrot.lane.b32.xlu0 %v662, 32
    %v709 = vpop.permute.xlu0 %708
    %710 = vrot.lane.b32.xlu0 %v663, 32
    %v711 = vpop.permute.xlu0 %710
    %v712 = vadd.f32 %v688, %v697
    %v713 = vadd.f32 %v689, %v699
    %v714 = vadd.f32 %v690, %v701
    %v715 = vadd.f32 %v691, %v703
    %v716 = vadd.f32 %v692, %v705
    %v717 = vadd.f32 %v693, %v707
    %v718 = vadd.f32 %v694, %v709
    %v719 = vadd.f32 %v695, %v711
    %v720 = vrot.slane %v656, 1
    %v721 = vrot.slane %v657, 1
    %v722 = vrot.slane %v658, 1
    %v723 = vrot.slane %v659, 1
    %v724 = vrot.slane %v660, 1
    %v725 = vrot.slane %v661, 1
    %v726 = vrot.slane %v662, 1
    %v727 = vrot.slane %v663, 1
    %v728 = vsel %vm465, %v726, %v727
    %v729 = vsel %vm465, %v725, %v726
    %v730 = vsel %vm465, %v724, %v725
    %v731 = vsel %vm465, %v723, %v724
    %v732 = vsel %vm465, %v722, %v723
    %v733 = vsel %vm465, %v721, %v722
    %v734 = vsel %vm465, %v720, %v721
    %v735 = vsel %vm465, %v727, %v720
    %v736 = vmul.f32 %v734, %v295
    %v737 = vmul.f32 %v733, %v296
    %v738 = vmul.f32 %v732, %v297
    %v739 = vmul.f32 %v731, %v298
    %v740 = vmul.f32 %v730, %v299
    %v741 = vmul.f32 %v729, %v300
    %v742 = vmul.f32 %v728, %v301
    %v743 = vmul.f32 %v735, %v302
    %744 = vrot.lane.b32.xlu0 %v736, 64
    %v745 = vpop.permute.xlu0 %744
    %746 = vrot.lane.b32.xlu0 %v737, 64
    %v747 = vpop.permute.xlu0 %746
    %748 = vrot.lane.b32.xlu0 %v738, 64
    %v749 = vpop.permute.xlu0 %748
    %750 = vrot.lane.b32.xlu0 %v739, 64
    %v751 = vpop.permute.xlu0 %750
    %752 = vrot.lane.b32.xlu0 %v740, 64
    %v753 = vpop.permute.xlu0 %752
    %754 = vrot.lane.b32.xlu0 %v741, 64
    %v755 = vpop.permute.xlu0 %754
    %756 = vrot.lane.b32.xlu0 %v742, 64
    %v757 = vpop.permute.xlu0 %756
    %758 = vrot.lane.b32.xlu0 %v743, 64
    %v759 = vpop.permute.xlu0 %758
    %v760 = vadd.f32 %v712, %v745
    %v761 = vadd.f32 %v713, %v747
    %v762 = vadd.f32 %v714, %v749
    %v763 = vadd.f32 %v715, %v751
    %v764 = vadd.f32 %v716, %v753
    %v765 = vadd.f32 %v717, %v755
    %v766 = vadd.f32 %v718, %v757
    %v767 = vadd.f32 %v719, %v759
    %v768 = vpack.c.bf16 %v761, %v760
    %v769 = vpack.c.bf16 %v763, %v762
    %v770 = vpack.c.bf16 %v765, %v764
    %v771 = vpack.c.bf16 %v767, %v766
    %s772 = scalar_lea.vmem [#allocation2], 64
    %v773 = vld [vmem:[%s772] sm:$0xf]
    %v774 = vld [vmem:[%s772 + $0x4] sm:$0xf]
    %v775 = vld [vmem:[%s772 + $0x8] sm:$0xf]
    %v776 = vld [vmem:[%s772 + $0xc] sm:$0xf]
    %v777 = vld [vmem:[%s772 + $0x10] sm:$0xf]
    %v778 = vld [vmem:[%s772 + $0x14] sm:$0xf]
    %v779 = vld [vmem:[%s772 + $0x18] sm:$0xf]
    %v780 = vld [vmem:[%s772 + $0x1c] sm:$0xf]
    %v781 = vld [vmem:[%s772 + $0x20] sm:$0xf]
    %v782 = vld [vmem:[%s772 + $0x24] sm:$0xf]
    %v783 = vld [vmem:[%s772 + $0x28] sm:$0xf]
    %v784 = vld [vmem:[%s772 + $0x2c] sm:$0xf]
    %v785 = vld [vmem:[%s772 + $0x30] sm:$0xf]
    %v786 = vld [vmem:[%s772 + $0x34] sm:$0xf]
    %v787 = vld [vmem:[%s772 + $0x38] sm:$0xf]
    %v788 = vld [vmem:[%s772 + $0x3c] sm:$0xf]
    %s789 = scalar_lea.vmem %s2, 1
    %v790 = vld [vmem:[%s789] sm:$0x1]
    %v792 = vperm.slane %v790, 0
    %v810 = vunpack.c.l.b16 %v773
    %v811 = vunpack.c.l.b16 %v774
    %v812 = vunpack.c.l.b16 %v775
    %v813 = vunpack.c.l.b16 %v776
    %v814 = vunpack.c.l.b16 %v777
    %v815 = vunpack.c.l.b16 %v778
    %v816 = vunpack.c.l.b16 %v779
    %v817 = vunpack.c.l.b16 %v780
    %v818 = vunpack.c.l.b16 %v781
    %v819 = vunpack.c.l.b16 %v782
    %v820 = vunpack.c.l.b16 %v783
    %v821 = vunpack.c.l.b16 %v784
    %v822 = vunpack.c.l.b16 %v785
    %v823 = vunpack.c.l.b16 %v786
    %v824 = vunpack.c.l.b16 %v787
    %v825 = vunpack.c.l.b16 %v788
    %v826 = vpack.c.b16 %v811, %v810
    %v827 = vpack.c.b16 %v813, %v812
    %v828 = vpack.c.b16 %v815, %v814
    %v829 = vpack.c.b16 %v817, %v816
    %v830 = vpack.c.b16 %v819, %v818
    %v831 = vpack.c.b16 %v821, %v820
    %v832 = vpack.c.b16 %v823, %v822
    %v833 = vpack.c.b16 %v825, %v824
    %842 = vmatpush.bf16.msra.mxu0 %v833
    %843 = vmatpush.bf16.msra.mxu0 %v832
    %844 = vmatpush.bf16.msra.mxu0 %v831
    %845 = vmatpush.bf16.msra.mxu0 %v830
    %846 = vmatpush.bf16.msra.mxu0 %v829
    %847 = vmatpush.bf16.msra.mxu0 %v828
    %848 = vmatpush.bf16.msra.mxu0 %v827
    %849 = vmatpush.bf16.msra.mxu0 %v826
    %850 = vmatmul.bf16.gmra.mxu0 %v768
    %v851 = vpop.f32.mrf.mxu0
    %v852 = vadd.f32 %v792, %v851
    %v853 = vpop.f32.mrf.mxu0
    %v854 = vadd.f32 %v792, %v853
    %855 = vmatmul.bf16.gmra.mxu0 %v769
    %v856 = vpop.f32.mrf.mxu0
    %v857 = vadd.f32 %v792, %v856
    %v858 = vpop.f32.mrf.mxu0
    %v859 = vadd.f32 %v792, %v858
    %860 = vmatmul.bf16.gmra.mxu0 %v770
    %v861 = vpop.f32.mrf.mxu0
    %v862 = vadd.f32 %v792, %v861
    %v863 = vpop.f32.mrf.mxu0
    %v864 = vadd.f32 %v792, %v863
    %865 = vmatmul.bf16.gmra.mxu0 %v771
    %v866 = vpop.f32.mrf.mxu0
    %v867 = vadd.f32 %v792, %v866
    %v868 = vpop.f32.mrf.mxu0
    %v869 = vadd.f32 %v792, %v868
    %870 = vdwg.mxu0
    %v871 = vmax.f32 %v852, 0.0
    %v872 = vmax.f32 %v854, 0.0
    %v873 = vmax.f32 %v857, 0.0
    %v874 = vmax.f32 %v859, 0.0
    %v875 = vmax.f32 %v862, 0.0
    %v876 = vmax.f32 %v864, 0.0
    %v877 = vmax.f32 %v867, 0.0
    %v878 = vmax.f32 %v869, 0.0
    %v879 = vrot.slane %v871, 7
    %v880 = vrot.slane %v872, 7
    %v881 = vrot.slane %v873, 7
    %v882 = vrot.slane %v874, 7
    %v883 = vrot.slane %v875, 7
    %v884 = vrot.slane %v876, 7
    %v885 = vrot.slane %v877, 7
    %v886 = vrot.slane %v878, 7
    %v887 = vsel %vm392, %v885, %v886
    %v888 = vsel %vm392, %v884, %v885
    %v889 = vsel %vm392, %v883, %v884
    %v890 = vsel %vm392, %v882, %v883
    %v891 = vsel %vm392, %v881, %v882
    %v892 = vsel %vm392, %v880, %v881
    %v893 = vsel %vm392, %v879, %v880
    %v894 = vsel %vm392, %v886, %v879
    %v895 = vmul.f32 %v894, %v247
    %v896 = vmul.f32 %v893, %v248
    %v897 = vmul.f32 %v892, %v249
    %v898 = vmul.f32 %v891, %v250
    %v899 = vmul.f32 %v890, %v251
    %v900 = vmul.f32 %v889, %v252
    %v901 = vmul.f32 %v888, %v253
    %v902 = vmul.f32 %v887, %v254
    %v903 = vadd.f32 %v895, 0.0
    %v904 = vadd.f32 %v896, 0.0
    %v905 = vadd.f32 %v897, 0.0
    %v906 = vadd.f32 %v898, 0.0
    %v907 = vadd.f32 %v899, 0.0
    %v908 = vadd.f32 %v900, 0.0
    %v909 = vadd.f32 %v901, 0.0
    %v910 = vadd.f32 %v902, 0.0
    %911 = vrot.lane.b32.xlu0 %v871, 32
    %v912 = vpop.permute.xlu0 %911
    %913 = vrot.lane.b32.xlu0 %v872, 32
    %v914 = vpop.permute.xlu0 %913
    %915 = vrot.lane.b32.xlu0 %v873, 32
    %v916 = vpop.permute.xlu0 %915
    %917 = vrot.lane.b32.xlu0 %v874, 32
    %v918 = vpop.permute.xlu0 %917
    %919 = vrot.lane.b32.xlu0 %v875, 32
    %v920 = vpop.permute.xlu0 %919
    %921 = vrot.lane.b32.xlu0 %v876, 32
    %v922 = vpop.permute.xlu0 %921
    %923 = vrot.lane.b32.xlu0 %v877, 32
    %v924 = vpop.permute.xlu0 %923
    %925 = vrot.lane.b32.xlu0 %v878, 32
    %v926 = vpop.permute.xlu0 %925
    %v927 = vadd.f32 %v903, %v912
    %v928 = vadd.f32 %v904, %v914
    %v929 = vadd.f32 %v905, %v916
    %v930 = vadd.f32 %v906, %v918
    %v931 = vadd.f32 %v907, %v920
    %v932 = vadd.f32 %v908, %v922
    %v933 = vadd.f32 %v909, %v924
    %v934 = vadd.f32 %v910, %v926
    %v935 = vrot.slane %v871, 1
    %v936 = vrot.slane %v872, 1
    %v937 = vrot.slane %v873, 1
    %v938 = vrot.slane %v874, 1
    %v939 = vrot.slane %v875, 1
    %v940 = vrot.slane %v876, 1
    %v941 = vrot.slane %v877, 1
    %v942 = vrot.slane %v878, 1
    %v943 = vsel %vm465, %v941, %v942
    %v944 = vsel %vm465, %v940, %v941
    %v945 = vsel %vm465, %v939, %v940
    %v946 = vsel %vm465, %v938, %v939
    %v947 = vsel %vm465, %v937, %v938
    %v948 = vsel %vm465, %v936, %v937
    %v949 = vsel %vm465, %v935, %v936
    %v950 = vsel %vm465, %v942, %v935
    %v951 = vmul.f32 %v949, %v295
    %v952 = vmul.f32 %v948, %v296
    %v953 = vmul.f32 %v947, %v297
    %v954 = vmul.f32 %v946, %v298
    %v955 = vmul.f32 %v945, %v299
    %v956 = vmul.f32 %v944, %v300
    %v957 = vmul.f32 %v943, %v301
    %v958 = vmul.f32 %v950, %v302
    %959 = vrot.lane.b32.xlu0 %v951, 64
    %v960 = vpop.permute.xlu0 %959
    %961 = vrot.lane.b32.xlu0 %v952, 64
    %v962 = vpop.permute.xlu0 %961
    %963 = vrot.lane.b32.xlu0 %v953, 64
    %v964 = vpop.permute.xlu0 %963
    %965 = vrot.lane.b32.xlu0 %v954, 64
    %v966 = vpop.permute.xlu0 %965
    %967 = vrot.lane.b32.xlu0 %v955, 64
    %v968 = vpop.permute.xlu0 %967
    %969 = vrot.lane.b32.xlu0 %v956, 64
    %v970 = vpop.permute.xlu0 %969
    %971 = vrot.lane.b32.xlu0 %v957, 64
    %v972 = vpop.permute.xlu0 %971
    %973 = vrot.lane.b32.xlu0 %v958, 64
    %v974 = vpop.permute.xlu0 %973
    %v975 = vadd.f32 %v927, %v960
    %v976 = vadd.f32 %v928, %v962
    %v977 = vadd.f32 %v929, %v964
    %v978 = vadd.f32 %v930, %v966
    %v979 = vadd.f32 %v931, %v968
    %v980 = vadd.f32 %v932, %v970
    %v981 = vadd.f32 %v933, %v972
    %v982 = vadd.f32 %v934, %v974
    %v983 = vpack.c.bf16 %v976, %v975
    %v984 = vpack.c.bf16 %v978, %v977
    %v985 = vpack.c.bf16 %v980, %v979
    %v986 = vpack.c.bf16 %v982, %v981
    %s987 = scalar_lea.vmem [#allocation2], 128
    %v988 = vld [vmem:[%s987] sm:$0xf]
    %v989 = vld [vmem:[%s987 + $0x4] sm:$0xf]
    %v990 = vld [vmem:[%s987 + $0x8] sm:$0xf]
    %v991 = vld [vmem:[%s987 + $0xc] sm:$0xf]
    %v992 = vld [vmem:[%s987 + $0x10] sm:$0xf]
    %v993 = vld [vmem:[%s987 + $0x14] sm:$0xf]
    %v994 = vld [vmem:[%s987 + $0x18] sm:$0xf]
    %v995 = vld [vmem:[%s987 + $0x1c] sm:$0xf]
    %v996 = vld [vmem:[%s987 + $0x20] sm:$0xf]
    %v997 = vld [vmem:[%s987 + $0x24] sm:$0xf]
    %v998 = vld [vmem:[%s987 + $0x28] sm:$0xf]
    %v999 = vld [vmem:[%s987 + $0x2c] sm:$0xf]
    %v1000 = vld [vmem:[%s987 + $0x30] sm:$0xf]
    %v1001 = vld [vmem:[%s987 + $0x34] sm:$0xf]
    %v1002 = vld [vmem:[%s987 + $0x38] sm:$0xf]
    %v1003 = vld [vmem:[%s987 + $0x3c] sm:$0xf]
    %s1004 = scalar_lea.vmem %s2, 2
    %v1005 = vld [vmem:[%s1004] sm:$0x1]
    %v1007 = vperm.slane %v1005, 0
    %v1025 = vunpack.c.l.b16 %v988
    %v1026 = vunpack.c.l.b16 %v989
    %v1027 = vunpack.c.l.b16 %v990
    %v1028 = vunpack.c.l.b16 %v991
    %v1029 = vunpack.c.l.b16 %v992
    %v1030 = vunpack.c.l.b16 %v993
    %v1031 = vunpack.c.l.b16 %v994
    %v1032 = vunpack.c.l.b16 %v995
    %v1033 = vunpack.c.l.b16 %v996
    %v1034 = vunpack.c.l.b16 %v997
    %v1035 = vunpack.c.l.b16 %v998
    %v1036 = vunpack.c.l.b16 %v999
    %v1037 = vunpack.c.l.b16 %v1000
    %v1038 = vunpack.c.l.b16 %v1001
    %v1039 = vunpack.c.l.b16 %v1002
    %v1040 = vunpack.c.l.b16 %v1003
    %v1041 = vpack.c.b16 %v1026, %v1025
    %v1042 = vpack.c.b16 %v1028, %v1027
    %v1043 = vpack.c.b16 %v1030, %v1029
    %v1044 = vpack.c.b16 %v1032, %v1031
    %v1045 = vpack.c.b16 %v1034, %v1033
    %v1046 = vpack.c.b16 %v1036, %v1035
    %v1047 = vpack.c.b16 %v1038, %v1037
    %v1048 = vpack.c.b16 %v1040, %v1039
    %1057 = vmatpush.bf16.msra.mxu0 %v1048
    %1058 = vmatpush.bf16.msra.mxu0 %v1047
    %1059 = vmatpush.bf16.msra.mxu0 %v1046
    %1060 = vmatpush.bf16.msra.mxu0 %v1045
    %1061 = vmatpush.bf16.msra.mxu0 %v1044
    %1062 = vmatpush.bf16.msra.mxu0 %v1043
    %1063 = vmatpush.bf16.msra.mxu0 %v1042
    %1064 = vmatpush.bf16.msra.mxu0 %v1041
    %1065 = vmatmul.bf16.gmra.mxu0 %v983
    %v1066 = vpop.f32.mrf.mxu0
    %v1067 = vadd.f32 %v1007, %v1066
    %v1068 = vpop.f32.mrf.mxu0
    %v1069 = vadd.f32 %v1007, %v1068
    %1070 = vmatmul.bf16.gmra.mxu0 %v984
    %v1071 = vpop.f32.mrf.mxu0
    %v1072 = vadd.f32 %v1007, %v1071
    %v1073 = vpop.f32.mrf.mxu0
    %v1074 = vadd.f32 %v1007, %v1073
    %1075 = vmatmul.bf16.gmra.mxu0 %v985
    %v1076 = vpop.f32.mrf.mxu0
    %v1077 = vadd.f32 %v1007, %v1076
    %v1078 = vpop.f32.mrf.mxu0
    %v1079 = vadd.f32 %v1007, %v1078
    %1080 = vmatmul.bf16.gmra.mxu0 %v986
    %v1081 = vpop.f32.mrf.mxu0
    %v1082 = vadd.f32 %v1007, %v1081
    %v1083 = vpop.f32.mrf.mxu0
    %v1084 = vadd.f32 %v1007, %v1083
    %1085 = vdwg.mxu0
    %v1086 = vmax.f32 %v1067, 0.0
    %v1087 = vmax.f32 %v1069, 0.0
    %v1088 = vmax.f32 %v1072, 0.0
    %v1089 = vmax.f32 %v1074, 0.0
    %v1090 = vmax.f32 %v1077, 0.0
    %v1091 = vmax.f32 %v1079, 0.0
    %v1092 = vmax.f32 %v1082, 0.0
    %v1093 = vmax.f32 %v1084, 0.0
    %v1094 = vpack.c.bf16 %v1087, %v1086
    %v1095 = vpack.c.bf16 %v1089, %v1088
    %v1096 = vpack.c.bf16 %v1091, %v1090
    %v1097 = vpack.c.bf16 %v1093, %v1092
    %s1098 = scalar_lea.vmem [#allocation2], 192
    %v1099 = vld [vmem:[%s1098] sm:$0xf]
    %v1100 = vld [vmem:[%s1098 + $0x4] sm:$0xf]
    %v1101 = vld [vmem:[%s1098 + $0x8] sm:$0xf]
    %v1102 = vld [vmem:[%s1098 + $0xc] sm:$0xf]
    %v1103 = vld [vmem:[%s1098 + $0x10] sm:$0xf]
    %v1104 = vld [vmem:[%s1098 + $0x14] sm:$0xf]
    %v1105 = vld [vmem:[%s1098 + $0x18] sm:$0xf]
    %v1106 = vld [vmem:[%s1098 + $0x1c] sm:$0xf]
    %v1107 = vld [vmem:[%s1098 + $0x20] sm:$0xf]
    %v1108 = vld [vmem:[%s1098 + $0x24] sm:$0xf]
    %v1109 = vld [vmem:[%s1098 + $0x28] sm:$0xf]
    %v1110 = vld [vmem:[%s1098 + $0x2c] sm:$0xf]
    %v1111 = vld [vmem:[%s1098 + $0x30] sm:$0xf]
    %v1112 = vld [vmem:[%s1098 + $0x34] sm:$0xf]
    %v1113 = vld [vmem:[%s1098 + $0x38] sm:$0xf]
    %v1114 = vld [vmem:[%s1098 + $0x3c] sm:$0xf]
    %s1115 = scalar_lea.vmem %s2, 3
    %v1116 = vld [vmem:[%s1115] sm:$0x1]
    %v1118 = vperm.slane %v1116, 0
    %v1136 = vunpack.c.l.b16 %v1099
    %v1137 = vunpack.c.l.b16 %v1100
    %v1138 = vunpack.c.l.b16 %v1101
    %v1139 = vunpack.c.l.b16 %v1102
    %v1140 = vunpack.c.l.b16 %v1103
    %v1141 = vunpack.c.l.b16 %v1104
    %v1142 = vunpack.c.l.b16 %v1105
    %v1143 = vunpack.c.l.b16 %v1106
    %v1144 = vunpack.c.l.b16 %v1107
    %v1145 = vunpack.c.l.b16 %v1108
    %v1146 = vunpack.c.l.b16 %v1109
    %v1147 = vunpack.c.l.b16 %v1110
    %v1148 = vunpack.c.l.b16 %v1111
    %v1149 = vunpack.c.l.b16 %v1112
    %v1150 = vunpack.c.l.b16 %v1113
    %v1151 = vunpack.c.l.b16 %v1114
    %v1152 = vpack.c.b16 %v1137, %v1136
    %v1153 = vpack.c.b16 %v1139, %v1138
    %v1154 = vpack.c.b16 %v1141, %v1140
    %v1155 = vpack.c.b16 %v1143, %v1142
    %v1156 = vpack.c.b16 %v1145, %v1144
    %v1157 = vpack.c.b16 %v1147, %v1146
    %v1158 = vpack.c.b16 %v1149, %v1148
    %v1159 = vpack.c.b16 %v1151, %v1150
    %1168 = vmatpush.bf16.msra.mxu0 %v1159
    %1169 = vmatpush.bf16.msra.mxu0 %v1158
    %1170 = vmatpush.bf16.msra.mxu0 %v1157
    %1171 = vmatpush.bf16.msra.mxu0 %v1156
    %1172 = vmatpush.bf16.msra.mxu0 %v1155
    %1173 = vmatpush.bf16.msra.mxu0 %v1154
    %1174 = vmatpush.bf16.msra.mxu0 %v1153
    %1175 = vmatpush.bf16.msra.mxu0 %v1152
    %1176 = vmatmul.bf16.gmra.mxu0 %v1094
    %v1177 = vpop.f32.mrf.mxu0
    %v1178 = vadd.f32 %v1118, %v1177
    %v1179 = vpop.f32.mrf.mxu0
    %v1180 = vadd.f32 %v1118, %v1179
    %1181 = vmatmul.bf16.gmra.mxu0 %v1095
    %v1182 = vpop.f32.mrf.mxu0
    %v1183 = vadd.f32 %v1118, %v1182
    %v1184 = vpop.f32.mrf.mxu0
    %v1185 = vadd.f32 %v1118, %v1184
    %1186 = vmatmul.bf16.gmra.mxu0 %v1096
    %v1187 = vpop.f32.mrf.mxu0
    %v1188 = vadd.f32 %v1118, %v1187
    %v1189 = vpop.f32.mrf.mxu0
    %v1190 = vadd.f32 %v1118, %v1189
    %1191 = vmatmul.bf16.gmra.mxu0 %v1097
    %v1192 = vpop.f32.mrf.mxu0
    %v1193 = vadd.f32 %v1118, %v1192
    %v1194 = vpop.f32.mrf.mxu0
    %v1195 = vadd.f32 %v1118, %v1194
    %1196 = vdwg.mxu0
    %v1197 = vmax.f32 %v1178, 0.0
    %v1198 = vmax.f32 %v1180, 0.0
    %v1199 = vmax.f32 %v1183, 0.0
    %v1200 = vmax.f32 %v1185, 0.0
    %v1201 = vmax.f32 %v1188, 0.0
    %v1202 = vmax.f32 %v1190, 0.0
    %v1203 = vmax.f32 %v1193, 0.0
    %v1204 = vmax.f32 %v1195, 0.0
    %v1205 = vpack.c.bf16 %v1198, %v1197
    %v1206 = vpack.c.bf16 %v1200, %v1199
    %v1207 = vpack.c.bf16 %v1202, %v1201
    %v1208 = vpack.c.bf16 %v1204, %v1203
    %s1209 = scalar_lea.vmem [#allocation2], 256
    %v1210 = vld [vmem:[%s1209] sm:$0xf]
    %v1211 = vld [vmem:[%s1209 + $0x4] sm:$0xf]
    %v1212 = vld [vmem:[%s1209 + $0x8] sm:$0xf]
    %v1213 = vld [vmem:[%s1209 + $0xc] sm:$0xf]
    %v1214 = vld [vmem:[%s1209 + $0x10] sm:$0xf]
    %v1215 = vld [vmem:[%s1209 + $0x14] sm:$0xf]
    %v1216 = vld [vmem:[%s1209 + $0x18] sm:$0xf]
    %v1217 = vld [vmem:[%s1209 + $0x1c] sm:$0xf]
    %v1218 = vld [vmem:[%s1209 + $0x20] sm:$0xf]
    %v1219 = vld [vmem:[%s1209 + $0x24] sm:$0xf]
    %v1220 = vld [vmem:[%s1209 + $0x28] sm:$0xf]
    %v1221 = vld [vmem:[%s1209 + $0x2c] sm:$0xf]
    %v1222 = vld [vmem:[%s1209 + $0x30] sm:$0xf]
    %v1223 = vld [vmem:[%s1209 + $0x34] sm:$0xf]
    %v1224 = vld [vmem:[%s1209 + $0x38] sm:$0xf]
    %v1225 = vld [vmem:[%s1209 + $0x3c] sm:$0xf]
    %s1226 = scalar_lea.vmem %s2, 4
    %v1227 = vld [vmem:[%s1226] sm:$0x1]
    %v1229 = vperm.slane %v1227, 0
    %v1247 = vunpack.c.l.b16 %v1210
    %v1248 = vunpack.c.l.b16 %v1211
    %v1249 = vunpack.c.l.b16 %v1212
    %v1250 = vunpack.c.l.b16 %v1213
    %v1251 = vunpack.c.l.b16 %v1214
    %v1252 = vunpack.c.l.b16 %v1215
    %v1253 = vunpack.c.l.b16 %v1216
    %v1254 = vunpack.c.l.b16 %v1217
    %v1255 = vunpack.c.l.b16 %v1218
    %v1256 = vunpack.c.l.b16 %v1219
    %v1257 = vunpack.c.l.b16 %v1220
    %v1258 = vunpack.c.l.b16 %v1221
    %v1259 = vunpack.c.l.b16 %v1222
    %v1260 = vunpack.c.l.b16 %v1223
    %v1261 = vunpack.c.l.b16 %v1224
    %v1262 = vunpack.c.l.b16 %v1225
    %v1263 = vpack.c.b16 %v1248, %v1247
    %v1264 = vpack.c.b16 %v1250, %v1249
    %v1265 = vpack.c.b16 %v1252, %v1251
    %v1266 = vpack.c.b16 %v1254, %v1253
    %v1267 = vpack.c.b16 %v1256, %v1255
    %v1268 = vpack.c.b16 %v1258, %v1257
    %v1269 = vpack.c.b16 %v1260, %v1259
    %v1270 = vpack.c.b16 %v1262, %v1261
    %1279 = vmatpush.bf16.msra.mxu0 %v1270
    %1280 = vmatpush.bf16.msra.mxu0 %v1269
    %1281 = vmatpush.bf16.msra.mxu0 %v1268
    %1282 = vmatpush.bf16.msra.mxu0 %v1267
    %1283 = vmatpush.bf16.msra.mxu0 %v1266
    %1284 = vmatpush.bf16.msra.mxu0 %v1265
    %1285 = vmatpush.bf16.msra.mxu0 %v1264
    %1286 = vmatpush.bf16.msra.mxu0 %v1263
    %1287 = vmatmul.bf16.gmra.mxu0 %v1205
    %v1288 = vpop.f32.mrf.mxu0
    %v1289 = vadd.f32 %v1229, %v1288
    %v1290 = vpop.f32.mrf.mxu0
    %v1291 = vadd.f32 %v1229, %v1290
    %1292 = vmatmul.bf16.gmra.mxu0 %v1206
    %v1293 = vpop.f32.mrf.mxu0
    %v1294 = vadd.f32 %v1229, %v1293
    %v1295 = vpop.f32.mrf.mxu0
    %v1296 = vadd.f32 %v1229, %v1295
    %1297 = vmatmul.bf16.gmra.mxu0 %v1207
    %v1298 = vpop.f32.mrf.mxu0
    %v1299 = vadd.f32 %v1229, %v1298
    %v1300 = vpop.f32.mrf.mxu0
    %v1301 = vadd.f32 %v1229, %v1300
    %1302 = vmatmul.bf16.gmra.mxu0 %v1208
    %v1303 = vpop.f32.mrf.mxu0
    %v1304 = vadd.f32 %v1229, %v1303
    %v1305 = vpop.f32.mrf.mxu0
    %v1306 = vadd.f32 %v1229, %v1305
    %1307 = vdwg.mxu0
    %v1308 = vmax.f32 %v1289, 0.0
    %v1309 = vmax.f32 %v1291, 0.0
    %v1310 = vmax.f32 %v1294, 0.0
    %v1311 = vmax.f32 %v1296, 0.0
    %v1312 = vmax.f32 %v1299, 0.0
    %v1313 = vmax.f32 %v1301, 0.0
    %v1314 = vmax.f32 %v1304, 0.0
    %v1315 = vmax.f32 %v1306, 0.0
    %v1316 = vadd.f32 %v1308, %v1309
    %v1317 = vadd.f32 %v1316, %v1310
    %v1318 = vadd.f32 %v1317, %v1311
    %v1319 = vrot.slane %v1318, 4
    %v1320 = vadd.f32 %v1318, %v1319
    %v1321 = vrot.slane %v1320, 2
    %v1322 = vadd.f32 %v1320, %v1321
    %v1323 = vrot.slane %v1322, 1
    %v1324 = vadd.f32 %v1322, %v1323
    %v1325 = vadd.f32 %v1312, %v1313
    %v1326 = vadd.f32 %v1325, %v1314
    %v1327 = vadd.f32 %v1326, %v1315
    %v1328 = vrot.slane %v1327, 4
    %v1329 = vadd.f32 %v1327, %v1328
    %v1330 = vrot.slane %v1329, 2
    %v1331 = vadd.f32 %v1329, %v1330
    %v1332 = vrot.slane %v1331, 1
    %v1333 = vadd.f32 %v1331, %v1332
    %v1334 = vmul.f32 %v1324, 0.03125
    %v1335 = vmul.f32 %v1333, 0.03125
    %v1336 = vsub.f32 %v1308, %v1334
    %v1337 = vsub.f32 %v1309, %v1334
    %v1338 = vsub.f32 %v1310, %v1334
    %v1339 = vsub.f32 %v1311, %v1334
    %v1340 = vsub.f32 %v1312, %v1335
    %v1341 = vsub.f32 %v1313, %v1335
    %v1342 = vsub.f32 %v1314, %v1335
    %v1343 = vsub.f32 %v1315, %v1335
    %v1344 = vmul.f32 %v1336, %v1336
    %v1345 = vmul.f32 %v1337, %v1337
    %v1346 = vmul.f32 %v1338, %v1338
    %v1347 = vmul.f32 %v1339, %v1339
    %v1348 = vmul.f32 %v1340, %v1340
    %v1349 = vmul.f32 %v1341, %v1341
    %v1350 = vmul.f32 %v1342, %v1342
    %v1351 = vmul.f32 %v1343, %v1343
    %v1352 = vadd.f32 %v1344, %v1345
    %v1353 = vadd.f32 %v1352, %v1346
    %v1354 = vadd.f32 %v1353, %v1347
    %v1355 = vrot.slane %v1354, 4
    %v1356 = vadd.f32 %v1354, %v1355
    %v1357 = vrot.slane %v1356, 2
    %v1358 = vadd.f32 %v1356, %v1357
    %v1359 = vrot.slane %v1358, 1
    %v1360 = vadd.f32 %v1358, %v1359
    %v1361 = vadd.f32 %v1348, %v1349
    %v1362 = vadd.f32 %v1361, %v1350
    %v1363 = vadd.f32 %v1362, %v1351
    %v1364 = vrot.slane %v1363, 4
    %v1365 = vadd.f32 %v1363, %v1364
    %v1366 = vrot.slane %v1365, 2
    %v1367 = vadd.f32 %v1365, %v1366
    %v1368 = vrot.slane %v1367, 1
    %v1369 = vadd.f32 %v1367, %v1368
    %v1370 = vmul.f32 %v1360, 0.032258064
    %v1371 = vmul.f32 %v1369, 0.032258064
    %v1372 = vrsqrt.pop %v1370
    %v1373 = vmul.f32 %v1372, %v1370
    %v1374 = vmul.f32 %v1373, %v1372
    %v1375 = vmul.f32 0.5, %v1374
    %v1376 = vsub.f32 1.5, %v1375
    %v1377 = vmul.f32 %v1372, %v1376
    %v1378 = vmul.f32 %v1370, %v1377
    %vm1379 = vcmp.eq.f32.partialorder %v1370, inf
    %v1380 = vsel %vm1379, %v1370, %v1378
    %vm1381 = vcmp.eq.f32.partialorder %v1370, 0.0
    %v1382 = vand.u32 %v1370, 2147483648
    %v1383 = vsel %vm1381, %v1382, %v1380
    %v1384 = vrsqrt.pop %v1371
    %v1385 = vmul.f32 %v1384, %v1371
    %v1386 = vmul.f32 %v1385, %v1384
    %v1387 = vmul.f32 0.5, %v1386
    %v1388 = vsub.f32 1.5, %v1387
    %v1389 = vmul.f32 %v1384, %v1388
    %v1390 = vmul.f32 %v1371, %v1389
    %vm1391 = vcmp.eq.f32.partialorder %v1371, inf
    %v1392 = vsel %vm1391, %v1371, %v1390
    %vm1393 = vcmp.eq.f32.partialorder %v1371, 0.0
    %v1394 = vand.u32 %v1371, 2147483648
    %v1395 = vsel %vm1393, %v1394, %v1392
    %vm1398 = vcmask 1041409
    %v1399 = vsel %vm1398, %v1395, %v1383
    %1401 = vrot.lane.b32.xlu0 %v1399, 32
    %v1402 = vpop.permute.xlu0 %1401
    %v1404 = vrot.slane %v1402, 1
    %v1407 = vadd.f32 %v1334, %v1402
    %v1408 = vadd.f32 %v1335, %v1404
    %v1409 = vpack.c.bf16 %v1407, %v1407
    %v1410 = vpack.c.bf16 %v1408, %v1408
    %v1411 = vld [vmem:[%s3] sm:$0xf]
    %v1412 = vld [vmem:[%s3 + $0x4] sm:$0xf]
    %v1413 = vld [vmem:[%s3 + $0x8] sm:$0xf]
    %v1414 = vld [vmem:[%s3 + $0xc] sm:$0xf]
    %v1415 = vld [vmem:[%s3 + $0x10] sm:$0xf]
    %v1416 = vld [vmem:[%s3 + $0x14] sm:$0xf]
    %v1417 = vld [vmem:[%s3 + $0x18] sm:$0xf]
    %v1418 = vld [vmem:[%s3 + $0x1c] sm:$0xf]
    %v1419 = vld [vmem:[%s3 + $0x20] sm:$0xf]
    %v1420 = vld [vmem:[%s3 + $0x24] sm:$0xf]
    %v1421 = vld [vmem:[%s3 + $0x28] sm:$0xf]
    %v1422 = vld [vmem:[%s3 + $0x2c] sm:$0xf]
    %v1423 = vld [vmem:[%s3 + $0x30] sm:$0xf]
    %v1424 = vld [vmem:[%s3 + $0x34] sm:$0xf]
    %v1425 = vld [vmem:[%s3 + $0x38] sm:$0xf]
    %v1426 = vld [vmem:[%s3 + $0x3c] sm:$0xf]
    %v1427 = vld [vmem:[%s4] sm:$0x1]
    %v1429 = vperm.slane %v1427, 0
    %v1433 = vunpack.c.l.b16 %v1409
    %v1434 = vunpack.c.l.b16 %v1410
    %v1435 = vrot.slane %v1434, 7
    %v1436 = vsel %vm1398, %v1435, %v1433
    %v1437 = vpack.c.b16 %v1436, %v1436
    %v1455 = vunpack.c.l.b16 %v1411
    %v1456 = vunpack.c.l.b16 %v1412
    %v1457 = vunpack.c.l.b16 %v1413
    %v1458 = vunpack.c.l.b16 %v1414
    %v1459 = vunpack.c.l.b16 %v1415
    %v1460 = vunpack.c.l.b16 %v1416
    %v1461 = vunpack.c.l.b16 %v1417
    %v1462 = vunpack.c.l.b16 %v1418
    %v1463 = vunpack.c.l.b16 %v1419
    %v1464 = vunpack.c.l.b16 %v1420
    %v1465 = vunpack.c.l.b16 %v1421
    %v1466 = vunpack.c.l.b16 %v1422
    %v1467 = vunpack.c.l.b16 %v1423
    %v1468 = vunpack.c.l.b16 %v1424
    %v1469 = vunpack.c.l.b16 %v1425
    %v1470 = vunpack.c.l.b16 %v1426
    %v1471 = vpack.c.b16 %v1456, %v1455
    %v1472 = vpack.c.b16 %v1458, %v1457
    %v1473 = vpack.c.b16 %v1460, %v1459
    %v1474 = vpack.c.b16 %v1462, %v1461
    %v1475 = vpack.c.b16 %v1464, %v1463
    %v1476 = vpack.c.b16 %v1466, %v1465
    %v1477 = vpack.c.b16 %v1468, %v1467
    %v1478 = vpack.c.b16 %v1470, %v1469
    %1487 = vmatpush.bf16.msra.mxu0 %v1478
    %1488 = vmatpush.bf16.msra.mxu0 %v1477
    %1489 = vmatpush.bf16.msra.mxu0 %v1476
    %1490 = vmatpush.bf16.msra.mxu0 %v1475
    %1491 = vmatpush.bf16.msra.mxu0 %v1474
    %1492 = vmatpush.bf16.msra.mxu0 %v1473
    %1493 = vmatpush.bf16.msra.mxu0 %v1472
    %1494 = vmatpush.bf16.msra.mxu0 %v1471
    %1495 = vmatmul.bf16.gmra.mxu0 %v1437
    %v1496 = vpop.f32.mrf.mxu0
    %v1497 = vadd.f32 %v1429, %v1496
    %v1498 = vpop.f32.mrf.mxu0
    %1499 = vdwg.mxu0
    %1500 = vst [vmem:[#allocation6] sm:$0x3] %v1497
    %v1501 = vmax.f32 %v1497, 0.0
    %v1502 = vpack.c.bf16 %v1501, %v1501
    %v1503 = vld [vmem:[%s5] sm:$0xf]
    %v1504 = vld [vmem:[%s5 + $0x4] sm:$0xf]
    %v1505 = vld [vmem:[%s5 + $0x8] sm:$0xf]
    %v1506 = vld [vmem:[%s5 + $0xc] sm:$0xf]
    %v1507 = vld [vmem:[%s5 + $0x10] sm:$0xf]
    %v1508 = vld [vmem:[%s5 + $0x14] sm:$0xf]
    %v1509 = vld [vmem:[%s5 + $0x18] sm:$0xf]
    %v1510 = vld [vmem:[%s5 + $0x1c] sm:$0xf]
    %v1511 = vld [vmem:[%s5 + $0x20] sm:$0xf]
    %v1512 = vld [vmem:[%s5 + $0x24] sm:$0xf]
    %v1513 = vld [vmem:[%s5 + $0x28] sm:$0xf]
    %v1514 = vld [vmem:[%s5 + $0x2c] sm:$0xf]
    %v1515 = vld [vmem:[%s5 + $0x30] sm:$0xf]
    %v1516 = vld [vmem:[%s5 + $0x34] sm:$0xf]
    %v1517 = vld [vmem:[%s5 + $0x38] sm:$0xf]
    %v1518 = vld [vmem:[%s5 + $0x3c] sm:$0xf]
    %v1519 = vld [vmem:[%s6] sm:$0x1]
    %v1521 = vperm.slane %v1519, 0
    %v1539 = vunpack.c.l.b16 %v1503
    %v1540 = vunpack.c.l.b16 %v1504
    %v1541 = vunpack.c.l.b16 %v1505
    %v1542 = vunpack.c.l.b16 %v1506
    %v1543 = vunpack.c.l.b16 %v1507
    %v1544 = vunpack.c.l.b16 %v1508
    %v1545 = vunpack.c.l.b16 %v1509
    %v1546 = vunpack.c.l.b16 %v1510
    %v1547 = vunpack.c.l.b16 %v1511
    %v1548 = vunpack.c.l.b16 %v1512
    %v1549 = vunpack.c.l.b16 %v1513
    %v1550 = vunpack.c.l.b16 %v1514
    %v1551 = vunpack.c.l.b16 %v1515
    %v1552 = vunpack.c.l.b16 %v1516
    %v1553 = vunpack.c.l.b16 %v1517
    %v1554 = vunpack.c.l.b16 %v1518
    %v1555 = vpack.c.b16 %v1540, %v1539
    %v1556 = vpack.c.b16 %v1542, %v1541
    %v1557 = vpack.c.b16 %v1544, %v1543
    %v1558 = vpack.c.b16 %v1546, %v1545
    %v1559 = vpack.c.b16 %v1548, %v1547
    %v1560 = vpack.c.b16 %v1550, %v1549
    %v1561 = vpack.c.b16 %v1552, %v1551
    %v1562 = vpack.c.b16 %v1554, %v1553
    %1571 = vmatpush.bf16.msra.mxu0 %v1562
    %1572 = vmatpush.bf16.msra.mxu0 %v1561
    %1573 = vmatpush.bf16.msra.mxu0 %v1560
    %1574 = vmatpush.bf16.msra.mxu0 %v1559
    %1575 = vmatpush.bf16.msra.mxu0 %v1558
    %1576 = vmatpush.bf16.msra.mxu0 %v1557
    %1577 = vmatpush.bf16.msra.mxu0 %v1556
    %1578 = vmatpush.bf16.msra.mxu0 %v1555
    %1579 = vmatmul.bf16.gmra.mxu0 %v1502
    %v1580 = vpop.f32.mrf.mxu0
    %v1581 = vadd.f32 %v1521, %v1580
    %v1582 = vpop.f32.mrf.mxu0
    %1583 = vdwg.mxu0
    %v1584 = vlaneseq
    %v1585 = vand.u32 %v1584, 127
    %vm1586 = vcmp.lt.s32.totalorder %v1585, 16
    %v1587 = vsel %vm1586, %v1581, -1e+30
    %vm1588 = vcmask 1041408
    %v1589 = vsel %vm1588, %v1587, -inf
    %1590 = vmax.xlane.f32.xlu0 %v1589
    %v1591 = vpop.xlane.xlu0 %1590
    %v1592 = vsub.f32 %v1587, %v1591
    %v1593 = vmul.f32 %v1592, 1.442695
    %v1594 = vpow.pop %v1593
    %v1595 = vsel %vm1588, %v1594, 0.0
    %1596 = vadd.xlane.f32.xlu0 %v1595
    %v1597 = vpop.xlane.xlu0 %1596
    %v1598 = vrcp.pop %v1597
    %v1599 = vmul.f32 %v1597, %v1598
    %v1600 = vsub.f32 2.0, %v1599
    %v1601 = vmul.f32 %v1598, %v1600
    %v1602 = vmul.f32 %v1594, %v1601
    %1603 = vst [vmem:[#allocation5] sm:$0x3] %v1602
    // Predicated region
    $region34: #{by_model_forward.1} parent=1 // pred_check
      _
    $region35: #{by_model_forward.1} parent=1 // pred_check_branch
      %1605 = sbr.rel (0) target = $region37
    $region36: #{by_model_forward.1} parent=1 // pred_region
      %1607 = vsyncadd [#allocation4], 0
      %s1609 = sshll.u32 [#allocation5], 4
      %s1610 = int_to_ptr.vmem [resolvable:$true] %s1609
      %s1611 = sshll.u32 %s7, 4
      %s1612 = int_to_ptr.hbm [resolvable:$true] %s1611
      %1614 = dma.vmem_to_hbm [thread:$0]  %s1610, 32, %s1612, [#allocation4]
    $region37: #{by_model_forward.1} parent=1 // pred_fallthru
      _
    // Predicated region
    $region38: #{by_model_forward.1} parent=1 // pred_check
      _
    $region39: #{by_model_forward.1} parent=1 // pred_check_branch
      %1616 = sbr.rel (0) target = $region41
    $region40: #{by_model_forward.1} parent=1 // pred_region
      %1618 = vsyncadd [#allocation7], 0
      %s1620 = sshll.u32 [#allocation6], 4
      %s1621 = int_to_ptr.vmem [resolvable:$true] %s1620
      %s1622 = sshll.u32 %s8, 4
      %s1623 = int_to_ptr.hbm [resolvable:$true] %s1622
      %1625 = dma.vmem_to_hbm [thread:$0]  %s1621, 32, %s1623, [#allocation7]
    $region41: #{by_model_forward.1} parent=1 // pred_fallthru
      _
    // Predicated region
    $region42: #{by_model_forward.1} parent=1 // pred_check
      _
    $region43: #{by_model_forward.1} parent=1 // pred_check_branch
      %1627 = sbr.rel (0) target = $region45
    $region44: #{by_model_forward.1} parent=1 // pred_region
      %1629 = dma.done [#allocation4], 32
    $region45: #{by_model_forward.1} parent=1 // pred_fallthru
      _
    // Predicated region
    $region46: #{by_model_forward.1} parent=1 // pred_check
      _
    $region47: #{by_model_forward.1} parent=1 // pred_check_branch
      %1631 = sbr.rel (0) target = $region49
    $region48: #{by_model_forward.1} parent=1 // pred_region
      %1633 = dma.done [#allocation7], 32
    $region49: #{by_model_forward.1} parent=1 // pred_fallthru
      _
    %1634 = vsyncpa [#allocation3], 1
    %1635 = vsyncpa [#allocation4], 1
    %1636 = vsyncpa [#allocation7], 1

</llo_original>
